<compile_context>
chip_gen: v6e
topology: v6e:2x2x1
jax: 0.10.0
libtpu: 0.0.40
codegen_flags: <defaults>
</compile_context>

<pallas_src>
import jax
import jax.numpy as jnp
import numpy as np
from jax import lax
from jax.experimental import pallas as pl
from jax.experimental.pallas import tpu as pltpu

# ---- small synthetic CLIP-text config ----
B, S, D = 2, 8, 32        # batch, context length, transformer width
H = 4                     # attention heads
HD = D // H               # head dim
MLP = 4 * D               # MLP hidden
P = 16                    # text_projection output dim
L = 2                     # transformer layers
TB = B                    # batch tile per grid step (TODO(synk): on v7x keep B//TB a multiple of 2)
EPS = 1e-5


def _ln(x, w, b):
    """LayerNorm over last axis in f32 (matches nn.LayerNorm(D))."""
    mu = jnp.mean(x, axis=-1, keepdims=True)
    xc = x - mu
    var = jnp.mean(xc * xc, axis=-1, keepdims=True)
    return xc * lax.rsqrt(var + EPS) * w + b


def _mxdot(a, b):
    """MXU matmul: bf16 operands, f32 accumulation."""
    return jnp.dot(a.astype(jnp.bfloat16), b.astype(jnp.bfloat16),
                   preferred_element_type=jnp.float32)


def _mxein(eq, a, b):
    """Batched MXU matmul (einsum): bf16 operands, f32 accumulation."""
    return jnp.einsum(eq, a.astype(jnp.bfloat16), b.astype(jnp.bfloat16),
                      preferred_element_type=jnp.float32)


# ----------------------------------------------------------------------------
# Fused Pallas kernel: one grid step = (batch tile bt, layer l)
# ----------------------------------------------------------------------------
def fused_text_encoder_kernel(
        x0_ref, pos_ref, eot_ref,                       # (TB,S,D), (S,D), (TB,S)
        ln1_w, ln1_b, w_qkv, b_qkv, w_proj, b_proj,
        ln2_w, ln2_b, w_fc1, b_fc1, w_fc2, b_fc2,
        lnf_w, lnf_b, tproj,
        o_ref,                                          # (TB, P) output slab
        x_scr):                                         # VMEM (TB,S,D) resident activation
    l = pl.program_id(1)            # layer index; only used at top level (interpret-safe)

    # ---- first layer of this batch tile: init resident activation with prompts+pos ----
    @pl.when(l == 0)
    def _init():
        x_scr[...] = x0_ref[...] + pos_ref[...]

    x = x_scr[...].reshape(TB * S, D)                   # flattened f32 residual stream

    # ---- x = x + MHA(ln_1(x)), causal ----
    xn = _ln(x, ln1_w[...], ln1_b[...])
    qkv = _mxdot(xn, w_qkv[...]) + b_qkv[...]           # fused QKV: one (D,3D) matmul
    scale = 1.0 / float(np.sqrt(HD))
    rows = lax.broadcasted_iota(jnp.int32, (S, S), 0)
    cols = lax.broadcasted_iota(jnp.int32, (S, S), 1)
    causal = (cols <= rows)[None]                       # (1, S, S)

    head_outs = []
    # TODO(synk): at real dims (H>=8, S padded to 128) use lax.fori_loop(unroll=True)
    # here to bound vreg live ranges.
    for h in range(H):
        qh = qkv[:, 0 * D + h * HD: 0 * D + (h + 1) * HD].reshape(TB, S, HD)
        kh = qkv[:, 1 * D + h * HD: 1 * D + (h + 1) * HD].reshape(TB, S, HD)
        vh = qkv[:, 2 * D + h * HD: 2 * D + (h + 1) * HD].reshape(TB, S, HD)
        s = _mxein("bqd,bkd->bqk", qh, kh) * scale      # (TB,S,S) f32 scores
        s = jnp.where(causal, s, -1e30)
        s = s - jnp.max(s, axis=-1, keepdims=True)
        p = jnp.exp(s)
        p = p / jnp.sum(p, axis=-1, keepdims=True)      # exact softmax in f32
        oh = _mxein("bqk,bkd->bqd", p, vh)              # (TB,S,HD)
        head_outs.append(oh.reshape(TB * S, HD))
    attn = jnp.concatenate(head_outs, axis=-1)          # heads partition D -> (TB*S, D)
    x = x + _mxdot(attn, w_proj[...]) + b_proj[...]     # single (D,D) output projection

    # ---- x = x + MLP(ln_2(x)); QuickGELU = x * sigmoid(1.702 x), f32 math ----
    xn2 = _ln(x, ln2_w[...], ln2_b[...])
    h1 = _mxdot(xn2, w_fc1[...]) + b_fc1[...]
    h1 = h1 * (1.0 / (1.0 + jnp.exp(-1.702 * h1)))
    x = x + _mxdot(h1, w_fc2[...]) + b_fc2[...]

    x3 = x.reshape(TB, S, D)
    x_scr[...] = x3

    # ---- last layer: EOT gather (one-hot) + ln_final + text_projection ----
    @pl.when(l == L - 1)
    def _finish():
        sel = jnp.sum(x3 * eot_ref[...][:, :, None], axis=1)     # (TB, D) EOT rows
        seln = _ln(sel, lnf_w[...], lnf_b[...])
        o_ref[...] = _mxdot(seln, tproj[...])                     # (TB, P) slab store
        # TODO(synk): for small P, pad the projection to a 128-lane multiple so the
        # store is unmasked (vst instead of vst.msk).


# ----------------------------------------------------------------------------
# index maps
# ----------------------------------------------------------------------------
def _bmap3(bt, l): return (bt, 0, 0)   # batch-tiled 3D block, resident across layers
def _bmap2(bt, l): return (bt, 0)      # batch-tiled 2D block
def _lmap3(bt, l): return (l, 0, 0)    # per-layer stacked weight (leading L squeezed)
def _cmap2(bt, l): return (0, 0)       # constant 2D block


# ----------------------------------------------------------------------------
# parameter packing: stack per-layer weights over L; matmul weights in bf16
# ----------------------------------------------------------------------------
def pack_layer_params(layers):
    st = lambda i: jnp.stack([lp[i] for lp in layers], axis=0)
    bf = lambda i: st(i).astype(jnp.bfloat16)
    return (st(0), st(1),          # ln1_w, ln1_b      (L,1,D)   f32
            bf(2), st(3),          # w_qkv (L,D,3D) bf16 ; b_qkv (L,1,3D) f32
            bf(4), st(5),          # w_proj (L,D,D) bf16 ; b_proj (L,1,D) f32
            st(6), st(7),          # ln2_w, ln2_b
            bf(8), st(9),          # w_fc1 (L,D,MLP) bf16 ; b_fc1 (L,1,MLP) f32
            bf(10), st(11))        # w_fc2 (L,MLP,D) bf16 ; b_fc2 (L,1,D) f32


# ----------------------------------------------------------------------------
# single fused pallas_call
# ----------------------------------------------------------------------------
def text_encoder_forward(prompts, tokenized_prompts, params):
    packed = pack_layer_params(params["layers"])
    # EOT index glue (tiny): argmax over token ids -> one-hot mask used for the gather
    eot = jnp.argmax(tokenized_prompts, axis=-1)
    eot_onehot = jax.nn.one_hot(eot, S, dtype=jnp.float32)        # (B, S)

    in_specs = [
        pl.BlockSpec((TB, S, D), _bmap3),          # prompts (batch tile, resident over L)
        pl.BlockSpec((S, D), _cmap2),              # positional embedding
        pl.BlockSpec((TB, S), _bmap2),             # EOT one-hot mask
        pl.BlockSpec((None, 1, D), _lmap3),        # ln1_w
        pl.BlockSpec((None, 1, D), _lmap3),        # ln1_b
        pl.BlockSpec((None, D, 3 * D), _lmap3),    # w_qkv (fused, lane-dense)
        pl.BlockSpec((None, 1, 3 * D), _lmap3),    # b_qkv
        pl.BlockSpec((None, D, D), _lmap3),        # w_proj
        pl.BlockSpec((None, 1, D), _lmap3),        # b_proj
        pl.BlockSpec((None, 1, D), _lmap3),        # ln2_w
        pl.BlockSpec((None, 1, D), _lmap3),        # ln2_b
        pl.BlockSpec((None, D, MLP), _lmap3),      # w_fc1
        pl.BlockSpec((None, 1, MLP), _lmap3),      # b_fc1
        pl.BlockSpec((None, MLP, D), _lmap3),      # w_fc2
        pl.BlockSpec((None, 1, D), _lmap3),        # b_fc2
        pl.BlockSpec((1, D), _cmap2),              # lnf_w
        pl.BlockSpec((1, D), _cmap2),              # lnf_b
        pl.BlockSpec((D, P), _cmap2),              # text_projection (bf16)
    ]

    out = pl.pallas_call(
        fused_text_encoder_kernel,
        out_shape=jax.ShapeDtypeStruct((B, P), jnp.float32),
        grid_spec=pltpu.PrefetchScalarGridSpec(
            num_scalar_prefetch=0,
            grid=(B // TB, L),                     # batch tiles outer, layers inner
            in_specs=in_specs,
            out_specs=pl.BlockSpec((TB, P), _bmap2),
            scratch_shapes=[pltpu.VMEM((TB, S, D), jnp.float32)],   # resident activation
        ),
        compiler_params=pltpu.CompilerParams(
            dimension_semantics=("parallel", "arbitrary"),
            vmem_limit_bytes=32 * 1024 * 1024),
    )(prompts, params["pos"], eot_onehot, *packed,
      params["lnf_w"], params["lnf_b"], params["tproj"].astype(jnp.bfloat16))
    return out


# ----------------------------------------------------------------------------
# deterministic synthetic parameters (shapes follow CLIP text transformer)
# ----------------------------------------------------------------------------
def init_params(key):
    ks = jax.random.split(key, 3 + L)
    params = {
        "pos":   0.02 * jax.random.normal(ks[0], (S, D), jnp.float32),
        "lnf_w": 1.0 + 0.1 * jax.random.normal(ks[1], (1, D), jnp.float32),
        "lnf_b": 0.1 * jax.random.normal(ks[1], (1, D), jnp.float32),
        "tproj": 0.05 * jax.random.normal(ks[2], (D, P), jnp.float32),
        "layers": [],
    }
    for l in range(L):
        sk = jax.random.split(ks[3 + l], 8)
        layer = (
            1.0 + 0.1 * jax.random.normal(sk[0], (1, D), jnp.float32),   # ln1_w
            0.1 * jax.random.normal(sk[1], (1, D), jnp.float32),         # ln1_b
            0.05 * jax.random.normal(sk[2], (D, 3 * D), jnp.float32),    # w_qkv (in, out)
            0.05 * jax.random.normal(sk[3], (1, 3 * D), jnp.float32),    # b_qkv
            0.05 * jax.random.normal(sk[4], (D, D), jnp.float32),        # w_proj (in, out)
            0.05 * jax.random.normal(sk[4], (1, D), jnp.float32),        # b_proj
            1.0 + 0.1 * jax.random.normal(sk[5], (1, D), jnp.float32),   # ln2_w
            0.1 * jax.random.normal(sk[5], (1, D), jnp.float32),         # ln2_b
            0.05 * jax.random.normal(sk[6], (D, MLP), jnp.float32),      # w_fc1 (in, out)
            0.05 * jax.random.normal(sk[6], (1, MLP), jnp.float32),      # b_fc1
            0.05 * jax.random.normal(sk[7], (MLP, D), jnp.float32),      # w_fc2 (in, out)
            0.05 * jax.random.normal(sk[7], (1, D), jnp.float32),        # b_fc2
        )
        params["layers"].append(layer)
    return params


# ----------------------------------------------------------------------------
# pure-JAX reference (same math, same bf16 MXU-operand precision) for correctness
# ----------------------------------------------------------------------------
def reference_forward(prompts, tokenized_prompts, params):
    x = prompts + params["pos"][None]
    causal = jnp.tril(jnp.ones((S, S), bool))
    for lp in params["layers"]:
        (ln1_w, ln1_b, w_qkv, b_qkv, w_proj, b_proj,
         ln2_w, ln2_b, w_fc1, b_fc1, w_fc2, b_fc2) = lp
        xn = _ln(x, ln1_w, ln1_b)
        qkv = _mxdot(xn, w_qkv) + b_qkv
        q, k, v = jnp.split(qkv, 3, axis=-1)
        q = q.reshape(B, S, H, HD)
        k = k.reshape(B, S, H, HD)
        v = v.reshape(B, S, H, HD)
        s = _mxein("bqhd,bkhd->bhqk", q, k) / float(np.sqrt(HD))
        s = jnp.where(causal[None, None], s, -1e30)
        p = jax.nn.softmax(s, axis=-1)
        o = _mxein("bhqk,bkhd->bqhd", p, v).reshape(B, S, D)
        x = x + _mxdot(o, w_proj) + b_proj
        xn2 = _ln(x, ln2_w, ln2_b)
        h1 = _mxdot(xn2, w_fc1) + b_fc1
        h1 = h1 * (1.0 / (1.0 + jnp.exp(-1.702 * h1)))
        x = x + _mxdot(h1, w_fc2) + b_fc2
    eot = jnp.argmax(tokenized_prompts, axis=-1)
    sel = x[jnp.arange(B), eot]
    seln = _ln(sel, params["lnf_w"], params["lnf_b"])
    return _mxdot(seln, params["tproj"])


if __name__ == "__main__":
    key = jax.random.PRNGKey(0)
    kp, kt = jax.random.split(key)
    params = init_params(kp)

    prompts = 0.1 * jax.random.normal(kt, (B, S, D), jnp.float32)
    # token ids with EOT (max id) at positions 5 and 7
    tokens = np.random.RandomState(0).randint(1, 100, size=(B, S)).astype(np.int32)
    tokens[0, 5] = 49407
    tokens[1, 7] = 49407
    tokenized_prompts = jnp.asarray(tokens)

    out = jax.block_until_ready(text_encoder_forward(prompts, tokenized_prompts, params))
    ref = jax.block_until_ready(reference_forward(prompts, tokenized_prompts, params))

    assert out.shape == (B, P)
    if not np.allclose(np.asarray(out), np.asarray(ref), atol=5e-3, rtol=5e-3):
        raise AssertionError("Pallas TextEncoder output mismatch vs reference")

    print("KERNEL_OK")
</pallas_src>

<mosaic_0001>
module attributes {stable_mosaic.version = 11 : i64} {
  func.func @fused_text_encoder_kernel(%arg0: i32, %arg1: i32, %arg2: memref<2x8x32xf32, #tpu.memory_space<vmem>>, %arg3: memref<8x32xf32, #tpu.memory_space<vmem>>, %arg4: memref<2x8xf32, #tpu.memory_space<vmem>>, %arg5: memref<1x1x32xf32, #tpu.memory_space<vmem>>, %arg6: memref<1x1x32xf32, #tpu.memory_space<vmem>>, %arg7: memref<1x32x96xbf16, #tpu.memory_space<vmem>>, %arg8: memref<1x1x96xf32, #tpu.memory_space<vmem>>, %arg9: memref<1x32x32xbf16, #tpu.memory_space<vmem>>, %arg10: memref<1x1x32xf32, #tpu.memory_space<vmem>>, %arg11: memref<1x1x32xf32, #tpu.memory_space<vmem>>, %arg12: memref<1x1x32xf32, #tpu.memory_space<vmem>>, %arg13: memref<1x32x128xbf16, #tpu.memory_space<vmem>>, %arg14: memref<1x1x128xf32, #tpu.memory_space<vmem>>, %arg15: memref<1x128x32xbf16, #tpu.memory_space<vmem>>, %arg16: memref<1x1x32xf32, #tpu.memory_space<vmem>>, %arg17: memref<1x32xf32, #tpu.memory_space<vmem>>, %arg18: memref<1x32xf32, #tpu.memory_space<vmem>>, %arg19: memref<32x16xbf16, #tpu.memory_space<vmem>>, %arg20: memref<2x16xf32, #tpu.memory_space<vmem>>, %arg21: memref<2x8x32xf32, #tpu.memory_space<vmem>>) attributes {dimension_semantics = [#tpu.dimension_semantics<parallel>, #tpu.dimension_semantics<arbitrary>], iteration_bounds = array<i64: 1, 2>, scalar_prefetch = 0 : i64, scratch_operands = 1 : i64, tpu.core_type = #tpu.core_type<tc>, window_params = [{transform_indices = @transform_0, window_bounds = array<i64: 2, 8, 32>}, {pipeline_mode = #tpu.pipeline_mode<synchronous>, transform_indices = @transform_1, window_bounds = array<i64: 8, 32>}, {transform_indices = @transform_2, window_bounds = array<i64: 2, 8>}, {transform_indices = @transform_3, window_bounds = array<i64: 1, 1, 32>}, {transform_indices = @transform_4, window_bounds = array<i64: 1, 1, 32>}, {transform_indices = @transform_5, window_bounds = array<i64: 1, 32, 96>}, {transform_indices = @transform_6, window_bounds = array<i64: 1, 1, 96>}, {transform_indices = @transform_7, window_bounds = array<i64: 1, 32, 32>}, {transform_indices = @transform_8, window_bounds = array<i64: 1, 1, 32>}, {transform_indices = @transform_9, window_bounds = array<i64: 1, 1, 32>}, {transform_indices = @transform_10, window_bounds = array<i64: 1, 1, 32>}, {transform_indices = @transform_11, window_bounds = array<i64: 1, 32, 128>}, {transform_indices = @transform_12, window_bounds = array<i64: 1, 1, 128>}, {transform_indices = @transform_13, window_bounds = array<i64: 1, 128, 32>}, {transform_indices = @transform_14, window_bounds = array<i64: 1, 1, 32>}, {pipeline_mode = #tpu.pipeline_mode<synchronous>, transform_indices = @transform_15, window_bounds = array<i64: 1, 32>}, {pipeline_mode = #tpu.pipeline_mode<synchronous>, transform_indices = @transform_16, window_bounds = array<i64: 1, 32>}, {pipeline_mode = #tpu.pipeline_mode<synchronous>, transform_indices = @transform_17, window_bounds = array<i64: 32, 16>}, {transform_indices = @transform_18, window_bounds = array<i64: 2, 16>}]} {
    %c0_i32 = arith.constant 0 : i32
    %0 = arith.cmpi eq, %arg1, %c0_i32 : i32
    %1 = arith.extui %0 : i1 to i32
    %c0_i32_0 = arith.constant 0 : i32
    %2 = arith.cmpi ne, %1, %c0_i32_0 : i32
    scf.if %2 {
      %c0_83 = arith.constant 0 : index
      %c0_84 = arith.constant 0 : index
      %c0_85 = arith.constant 0 : index
      %217 = vector.load %arg2[%c0_83, %c0_84, %c0_85] : memref<2x8x32xf32, #tpu.memory_space<vmem>>, vector<2x8x32xf32>
      %c0_86 = arith.constant 0 : index
      %c0_87 = arith.constant 0 : index
      %218 = vector.load %arg3[%c0_86, %c0_87] : memref<8x32xf32, #tpu.memory_space<vmem>>, vector<8x32xf32>
      %219 = vector.shape_cast %218 : vector<8x32xf32> to vector<1x8x32xf32>
      %220 = vector.broadcast %219 : vector<1x8x32xf32> to vector<2x8x32xf32>
      %221 = arith.addf %217, %220 : vector<2x8x32xf32>
      %c0_88 = arith.constant 0 : index
      %c0_89 = arith.constant 0 : index
      %c0_90 = arith.constant 0 : index
      %222 = vector.load %arg21[%c0_88, %c0_89, %c0_90] : memref<2x8x32xf32, #tpu.memory_space<vmem>>, vector<2x8x32xf32>
      tpu.vector_store %arg21[%c0_88, %c0_89, %c0_90], %221 {strides = array<i32>} : memref<2x8x32xf32, #tpu.memory_space<vmem>>, vector<2x8x32xf32>,
    } else {
    }
    %c0 = arith.constant 0 : index
    %c0_1 = arith.constant 0 : index
    %c0_2 = arith.constant 0 : index
    %3 = vector.load %arg21[%c0, %c0_1, %c0_2] : memref<2x8x32xf32, #tpu.memory_space<vmem>>, vector<2x8x32xf32>
    %4 = vector.shape_cast %3 : vector<2x8x32xf32> to vector<16x32xf32>
    %c0_3 = arith.constant 0 : index
    %c0_4 = arith.constant 0 : index
    %c0_5 = arith.constant 0 : index
    %5 = vector.load %arg5[%c0_3, %c0_4, %c0_5] : memref<1x1x32xf32, #tpu.memory_space<vmem>>, vector<1x1x32xf32>
    %6 = vector.shape_cast %5 : vector<1x1x32xf32> to vector<1x32xf32>
    %c0_6 = arith.constant 0 : index
    %c0_7 = arith.constant 0 : index
    %c0_8 = arith.constant 0 : index
    %7 = vector.load %arg6[%c0_6, %c0_7, %c0_8] : memref<1x1x32xf32, #tpu.memory_space<vmem>>, vector<1x1x32xf32>
    %8 = vector.shape_cast %7 : vector<1x1x32xf32> to vector<1x32xf32>
    %cst = arith.constant dense<0.000000e+00> : vector<16xf32>
    %9 = vector.multi_reduction <add>, %4, %cst [1] : vector<16x32xf32> to vector<16xf32>
    %10 = vector.shape_cast %9 : vector<16xf32> to vector<16x1xf32>
    %cst_9 = arith.constant 3.200000e+01 : f32
    %11 = vector.broadcast %cst_9 : f32 to vector<16x1xf32>
    %12 = arith.divf %10, %11 : vector<16x1xf32>
    %13 = vector.broadcast %12 : vector<16x1xf32> to vector<16x32xf32>
    %14 = arith.subf %4, %13 : vector<16x32xf32>
    %15 = arith.mulf %14, %14 : vector<16x32xf32>
    %cst_10 = arith.constant dense<0.000000e+00> : vector<16xf32>
    %16 = vector.multi_reduction <add>, %15, %cst_10 [1] : vector<16x32xf32> to vector<16xf32>
    %17 = vector.shape_cast %16 : vector<16xf32> to vector<16x1xf32>
    %cst_11 = arith.constant 3.200000e+01 : f32
    %18 = vector.broadcast %cst_11 : f32 to vector<16x1xf32>
    %19 = arith.divf %17, %18 : vector<16x1xf32>
    %cst_12 = arith.constant 9.99999974E-6 : f32
    %20 = vector.broadcast %cst_12 : f32 to vector<16x1xf32>
    %21 = arith.addf %19, %20 : vector<16x1xf32>
    %22 = math.rsqrt %21 : vector<16x1xf32>
    %23 = vector.broadcast %22 : vector<16x1xf32> to vector<16x32xf32>
    %24 = arith.mulf %14, %23 : vector<16x32xf32>
    %25 = vector.broadcast %6 : vector<1x32xf32> to vector<16x32xf32>
    %26 = arith.mulf %24, %25 : vector<16x32xf32>
    %27 = vector.broadcast %8 : vector<1x32xf32> to vector<16x32xf32>
    %28 = arith.addf %26, %27 : vector<16x32xf32>
    %c0_13 = arith.constant 0 : index
    %c0_14 = arith.constant 0 : index
    %c0_15 = arith.constant 0 : index
    %29 = vector.load %arg7[%c0_13, %c0_14, %c0_15] : memref<1x32x96xbf16, #tpu.memory_space<vmem>>, vector<1x32x96xbf16>
    %30 = vector.shape_cast %29 : vector<1x32x96xbf16> to vector<32x96xbf16>
    %31 = arith.truncf %28 : vector<16x32xf32> to vector<16x32xbf16>
    %cst_16 = arith.constant dense<0.000000e+00> : vector<16x96xf32>
    %32 = tpu.matmul %31, %30, %cst_16 {dimension_numbers = #tpu.dot_dimension_numbers<[1], [0], [0], [1], [0, 0, 1, 1], [], []>} : vector<16x32xbf16>, vector<32x96xbf16>, vector<16x96xf32> -> vector<16x96xf32>
    %c0_17 = arith.constant 0 : index
    %c0_18 = arith.constant 0 : index
    %c0_19 = arith.constant 0 : index
    %33 = vector.load %arg8[%c0_17, %c0_18, %c0_19] : memref<1x1x96xf32, #tpu.memory_space<vmem>>, vector<1x1x96xf32>
    %34 = vector.shape_cast %33 : vector<1x1x96xf32> to vector<1x96xf32>
    %35 = vector.broadcast %34 : vector<1x96xf32> to vector<16x96xf32>
    %36 = arith.addf %32, %35 : vector<16x96xf32>
    %37 = tpu.iota {dimensions = array<i32: 0>} : vector<8x8xi32>
    %38 = tpu.iota {dimensions = array<i32: 1>} : vector<8x8xi32>
    %39 = arith.cmpi sle, %38, %37 : vector<8x8xi32>
    %40 = vector.shape_cast %39 : vector<8x8xi1> to vector<1x8x8xi1>
    %41 = vector.extract_strided_slice %36 {offsets = [0, 0], sizes = [16, 8], strides = [1, 1]} : vector<16x96xf32> to vector<16x8xf32>
    %42 = vector.shape_cast %41 : vector<16x8xf32> to vector<2x8x8xf32>
    %43 = vector.extract_strided_slice %36 {offsets = [0, 32], sizes = [16, 8], strides = [1, 1]} : vector<16x96xf32> to vector<16x8xf32>
    %44 = vector.shape_cast %43 : vector<16x8xf32> to vector<2x8x8xf32>
    %45 = vector.extract_strided_slice %36 {offsets = [0, 64], sizes = [16, 8], strides = [1, 1]} : vector<16x96xf32> to vector<16x8xf32>
    %46 = vector.shape_cast %45 : vector<16x8xf32> to vector<2x8x8xf32>
    %47 = arith.truncf %42 : vector<2x8x8xf32> to vector<2x8x8xbf16>
    %48 = arith.truncf %44 : vector<2x8x8xf32> to vector<2x8x8xbf16>
    "tpu.trace_start"() <{level = 10 : i32, message = "bqd,bkd->bqk"}> : () -> ()
    %cst_20 = arith.constant dense<0.000000e+00> : vector<2x8x8xf32>
    %49 = tpu.matmul %47, %48, %cst_20 {dimension_numbers = #tpu.dot_dimension_numbers<[2], [2], [1], [1], [0, 0, 0, 1, 1, 1], [0], [0]>} : vector<2x8x8xbf16>, vector<2x8x8xbf16>, vector<2x8x8xf32> -> vector<2x8x8xf32>
    "tpu.trace_stop"() : () -> ()
    %cst_21 = arith.constant 0.353553385 : f32
    %50 = vector.broadcast %cst_21 : f32 to vector<2x8x8xf32>
    %51 = arith.mulf %49, %50 : vector<2x8x8xf32>
    %cst_22 = arith.constant -1.000000e+30 : f32
    %52 = vector.shape_cast %40 : vector<1x8x8xi1> to vector<1x8x8xi1>
    %53 = vector.broadcast %52 : vector<1x8x8xi1> to vector<2x8x8xi1>
    %54 = vector.broadcast %cst_22 : f32 to vector<2x8x8xf32>
    %55 = arith.select %53, %51, %54 : vector<2x8x8xi1>, vector<2x8x8xf32>
    %cst_23 = arith.constant dense<0xFF800000> : vector<2x8xf32>
    %56 = vector.multi_reduction <maximumf>, %55, %cst_23 [2] : vector<2x8x8xf32> to vector<2x8xf32>
    %57 = vector.shape_cast %56 : vector<2x8xf32> to vector<2x8x1xf32>
    %58 = vector.broadcast %57 : vector<2x8x1xf32> to vector<2x8x8xf32>
    %59 = arith.subf %55, %58 : vector<2x8x8xf32>
    %60 = math.exp %59 : vector<2x8x8xf32>
    %cst_24 = arith.constant dense<0.000000e+00> : vector<2x8xf32>
    %61 = vector.multi_reduction <add>, %60, %cst_24 [2] : vector<2x8x8xf32> to vector<2x8xf32>
    %62 = vector.shape_cast %61 : vector<2x8xf32> to vector<2x8x1xf32>
    %63 = vector.broadcast %62 : vector<2x8x1xf32> to vector<2x8x8xf32>
    %64 = arith.divf %60, %63 : vector<2x8x8xf32>
    %65 = arith.truncf %64 : vector<2x8x8xf32> to vector<2x8x8xbf16>
    %66 = arith.truncf %46 : vector<2x8x8xf32> to vector<2x8x8xbf16>
    "tpu.trace_start"() <{level = 10 : i32, message = "bqk,bkd->bqd"}> : () -> ()
    %cst_25 = arith.constant dense<0.000000e+00> : vector<2x8x8xf32>
    %67 = tpu.matmul %65, %66, %cst_25 {dimension_numbers = #tpu.dot_dimension_numbers<[2], [1], [1], [2], [0, 0, 0, 1, 1, 2], [0], [0]>} : vector<2x8x8xbf16>, vector<2x8x8xbf16>, vector<2x8x8xf32> -> vector<2x8x8xf32>
    "tpu.trace_stop"() : () -> ()
    %68 = vector.shape_cast %67 : vector<2x8x8xf32> to vector<16x8xf32>
    %69 = vector.extract_strided_slice %36 {offsets = [0, 8], sizes = [16, 8], strides = [1, 1]} : vector<16x96xf32> to vector<16x8xf32>
    %70 = vector.shape_cast %69 : vector<16x8xf32> to vector<2x8x8xf32>
    %71 = vector.extract_strided_slice %36 {offsets = [0, 40], sizes = [16, 8], strides = [1, 1]} : vector<16x96xf32> to vector<16x8xf32>
    %72 = vector.shape_cast %71 : vector<16x8xf32> to vector<2x8x8xf32>
    %73 = vector.extract_strided_slice %36 {offsets = [0, 72], sizes = [16, 8], strides = [1, 1]} : vector<16x96xf32> to vector<16x8xf32>
    %74 = vector.shape_cast %73 : vector<16x8xf32> to vector<2x8x8xf32>
    %75 = arith.truncf %70 : vector<2x8x8xf32> to vector<2x8x8xbf16>
    %76 = arith.truncf %72 : vector<2x8x8xf32> to vector<2x8x8xbf16>
    "tpu.trace_start"() <{level = 10 : i32, message = "bqd,bkd->bqk"}> : () -> ()
    %cst_26 = arith.constant dense<0.000000e+00> : vector<2x8x8xf32>
    %77 = tpu.matmul %75, %76, %cst_26 {dimension_numbers = #tpu.dot_dimension_numbers<[2], [2], [1], [1], [0, 0, 0, 1, 1, 1], [0], [0]>} : vector<2x8x8xbf16>, vector<2x8x8xbf16>, vector<2x8x8xf32> -> vector<2x8x8xf32>
    "tpu.trace_stop"() : () -> ()
    %cst_27 = arith.constant 0.353553385 : f32
    %78 = vector.broadcast %cst_27 : f32 to vector<2x8x8xf32>
    %79 = arith.mulf %77, %78 : vector<2x8x8xf32>
    %cst_28 = arith.constant -1.000000e+30 : f32
    %80 = vector.shape_cast %40 : vector<1x8x8xi1> to vector<1x8x8xi1>
    %81 = vector.broadcast %80 : vector<1x8x8xi1> to vector<2x8x8xi1>
    %82 = vector.broadcast %cst_28 : f32 to vector<2x8x8xf32>
    %83 = arith.select %81, %79, %82 : vector<2x8x8xi1>, vector<2x8x8xf32>
    %cst_29 = arith.constant dense<0xFF800000> : vector<2x8xf32>
    %84 = vector.multi_reduction <maximumf>, %83, %cst_29 [2] : vector<2x8x8xf32> to vector<2x8xf32>
    %85 = vector.shape_cast %84 : vector<2x8xf32> to vector<2x8x1xf32>
    %86 = vector.broadcast %85 : vector<2x8x1xf32> to vector<2x8x8xf32>
    %87 = arith.subf %83, %86 : vector<2x8x8xf32>
    %88 = math.exp %87 : vector<2x8x8xf32>
    %cst_30 = arith.constant dense<0.000000e+00> : vector<2x8xf32>
    %89 = vector.multi_reduction <add>, %88, %cst_30 [2] : vector<2x8x8xf32> to vector<2x8xf32>
    %90 = vector.shape_cast %89 : vector<2x8xf32> to vector<2x8x1xf32>
    %91 = vector.broadcast %90 : vector<2x8x1xf32> to vector<2x8x8xf32>
    %92 = arith.divf %88, %91 : vector<2x8x8xf32>
    %93 = arith.truncf %92 : vector<2x8x8xf32> to vector<2x8x8xbf16>
    %94 = arith.truncf %74 : vector<2x8x8xf32> to vector<2x8x8xbf16>
    "tpu.trace_start"() <{level = 10 : i32, message = "bqk,bkd->bqd"}> : () -> ()
    %cst_31 = arith.constant dense<0.000000e+00> : vector<2x8x8xf32>
    %95 = tpu.matmul %93, %94, %cst_31 {dimension_numbers = #tpu.dot_dimension_numbers<[2], [1], [1], [2], [0, 0, 0, 1, 1, 2], [0], [0]>} : vector<2x8x8xbf16>, vector<2x8x8xbf16>, vector<2x8x8xf32> -> vector<2x8x8xf32>
    "tpu.trace_stop"() : () -> ()
    %96 = vector.shape_cast %95 : vector<2x8x8xf32> to vector<16x8xf32>
    %97 = vector.extract_strided_slice %36 {offsets = [0, 16], sizes = [16, 8], strides = [1, 1]} : vector<16x96xf32> to vector<16x8xf32>
    %98 = vector.shape_cast %97 : vector<16x8xf32> to vector<2x8x8xf32>
    %99 = vector.extract_strided_slice %36 {offsets = [0, 48], sizes = [16, 8], strides = [1, 1]} : vector<16x96xf32> to vector<16x8xf32>
    %100 = vector.shape_cast %99 : vector<16x8xf32> to vector<2x8x8xf32>
    %101 = vector.extract_strided_slice %36 {offsets = [0, 80], sizes = [16, 8], strides = [1, 1]} : vector<16x96xf32> to vector<16x8xf32>
    %102 = vector.shape_cast %101 : vector<16x8xf32> to vector<2x8x8xf32>
    %103 = arith.truncf %98 : vector<2x8x8xf32> to vector<2x8x8xbf16>
    %104 = arith.truncf %100 : vector<2x8x8xf32> to vector<2x8x8xbf16>
    "tpu.trace_start"() <{level = 10 : i32, message = "bqd,bkd->bqk"}> : () -> ()
    %cst_32 = arith.constant dense<0.000000e+00> : vector<2x8x8xf32>
    %105 = tpu.matmul %103, %104, %cst_32 {dimension_numbers = #tpu.dot_dimension_numbers<[2], [2], [1], [1], [0, 0, 0, 1, 1, 1], [0], [0]>} : vector<2x8x8xbf16>, vector<2x8x8xbf16>, vector<2x8x8xf32> -> vector<2x8x8xf32>
    "tpu.trace_stop"() : () -> ()
    %cst_33 = arith.constant 0.353553385 : f32
    %106 = vector.broadcast %cst_33 : f32 to vector<2x8x8xf32>
    %107 = arith.mulf %105, %106 : vector<2x8x8xf32>
    %cst_34 = arith.constant -1.000000e+30 : f32
    %108 = vector.shape_cast %40 : vector<1x8x8xi1> to vector<1x8x8xi1>
    %109 = vector.broadcast %108 : vector<1x8x8xi1> to vector<2x8x8xi1>
    %110 = vector.broadcast %cst_34 : f32 to vector<2x8x8xf32>
    %111 = arith.select %109, %107, %110 : vector<2x8x8xi1>, vector<2x8x8xf32>
    %cst_35 = arith.constant dense<0xFF800000> : vector<2x8xf32>
    %112 = vector.multi_reduction <maximumf>, %111, %cst_35 [2] : vector<2x8x8xf32> to vector<2x8xf32>
    %113 = vector.shape_cast %112 : vector<2x8xf32> to vector<2x8x1xf32>
    %114 = vector.broadcast %113 : vector<2x8x1xf32> to vector<2x8x8xf32>
    %115 = arith.subf %111, %114 : vector<2x8x8xf32>
    %116 = math.exp %115 : vector<2x8x8xf32>
    %cst_36 = arith.constant dense<0.000000e+00> : vector<2x8xf32>
    %117 = vector.multi_reduction <add>, %116, %cst_36 [2] : vector<2x8x8xf32> to vector<2x8xf32>
    %118 = vector.shape_cast %117 : vector<2x8xf32> to vector<2x8x1xf32>
    %119 = vector.broadcast %118 : vector<2x8x1xf32> to vector<2x8x8xf32>
    %120 = arith.divf %116, %119 : vector<2x8x8xf32>
    %121 = arith.truncf %120 : vector<2x8x8xf32> to vector<2x8x8xbf16>
    %122 = arith.truncf %102 : vector<2x8x8xf32> to vector<2x8x8xbf16>
    "tpu.trace_start"() <{level = 10 : i32, message = "bqk,bkd->bqd"}> : () -> ()
    %cst_37 = arith.constant dense<0.000000e+00> : vector<2x8x8xf32>
    %123 = tpu.matmul %121, %122, %cst_37 {dimension_numbers = #tpu.dot_dimension_numbers<[2], [1], [1], [2], [0, 0, 0, 1, 1, 2], [0], [0]>} : vector<2x8x8xbf16>, vector<2x8x8xbf16>, vector<2x8x8xf32> -> vector<2x8x8xf32>
    "tpu.trace_stop"() : () -> ()
    %124 = vector.shape_cast %123 : vector<2x8x8xf32> to vector<16x8xf32>
    %125 = vector.extract_strided_slice %36 {offsets = [0, 24], sizes = [16, 8], strides = [1, 1]} : vector<16x96xf32> to vector<16x8xf32>
    %126 = vector.shape_cast %125 : vector<16x8xf32> to vector<2x8x8xf32>
    %127 = vector.extract_strided_slice %36 {offsets = [0, 56], sizes = [16, 8], strides = [1, 1]} : vector<16x96xf32> to vector<16x8xf32>
    %128 = vector.shape_cast %127 : vector<16x8xf32> to vector<2x8x8xf32>
    %129 = vector.extract_strided_slice %36 {offsets = [0, 88], sizes = [16, 8], strides = [1, 1]} : vector<16x96xf32> to vector<16x8xf32>
    %130 = vector.shape_cast %129 : vector<16x8xf32> to vector<2x8x8xf32>
    %131 = arith.truncf %126 : vector<2x8x8xf32> to vector<2x8x8xbf16>
    %132 = arith.truncf %128 : vector<2x8x8xf32> to vector<2x8x8xbf16>
    "tpu.trace_start"() <{level = 10 : i32, message = "bqd,bkd->bqk"}> : () -> ()
    %cst_38 = arith.constant dense<0.000000e+00> : vector<2x8x8xf32>
    %133 = tpu.matmul %131, %132, %cst_38 {dimension_numbers = #tpu.dot_dimension_numbers<[2], [2], [1], [1], [0, 0, 0, 1, 1, 1], [0], [0]>} : vector<2x8x8xbf16>, vector<2x8x8xbf16>, vector<2x8x8xf32> -> vector<2x8x8xf32>
    "tpu.trace_stop"() : () -> ()
    %cst_39 = arith.constant 0.353553385 : f32
    %134 = vector.broadcast %cst_39 : f32 to vector<2x8x8xf32>
    %135 = arith.mulf %133, %134 : vector<2x8x8xf32>
    %cst_40 = arith.constant -1.000000e+30 : f32
    %136 = vector.shape_cast %40 : vector<1x8x8xi1> to vector<1x8x8xi1>
    %137 = vector.broadcast %136 : vector<1x8x8xi1> to vector<2x8x8xi1>
    %138 = vector.broadcast %cst_40 : f32 to vector<2x8x8xf32>
    %139 = arith.select %137, %135, %138 : vector<2x8x8xi1>, vector<2x8x8xf32>
    %cst_41 = arith.constant dense<0xFF800000> : vector<2x8xf32>
    %140 = vector.multi_reduction <maximumf>, %139, %cst_41 [2] : vector<2x8x8xf32> to vector<2x8xf32>
    %141 = vector.shape_cast %140 : vector<2x8xf32> to vector<2x8x1xf32>
    %142 = vector.broadcast %141 : vector<2x8x1xf32> to vector<2x8x8xf32>
    %143 = arith.subf %139, %142 : vector<2x8x8xf32>
    %144 = math.exp %143 : vector<2x8x8xf32>
    %cst_42 = arith.constant dense<0.000000e+00> : vector<2x8xf32>
    %145 = vector.multi_reduction <add>, %144, %cst_42 [2] : vector<2x8x8xf32> to vector<2x8xf32>
    %146 = vector.shape_cast %145 : vector<2x8xf32> to vector<2x8x1xf32>
    %147 = vector.broadcast %146 : vector<2x8x1xf32> to vector<2x8x8xf32>
    %148 = arith.divf %144, %147 : vector<2x8x8xf32>
    %149 = arith.truncf %148 : vector<2x8x8xf32> to vector<2x8x8xbf16>
    %150 = arith.truncf %130 : vector<2x8x8xf32> to vector<2x8x8xbf16>
    "tpu.trace_start"() <{level = 10 : i32, message = "bqk,bkd->bqd"}> : () -> ()
    %cst_43 = arith.constant dense<0.000000e+00> : vector<2x8x8xf32>
    %151 = tpu.matmul %149, %150, %cst_43 {dimension_numbers = #tpu.dot_dimension_numbers<[2], [1], [1], [2], [0, 0, 0, 1, 1, 2], [0], [0]>} : vector<2x8x8xbf16>, vector<2x8x8xbf16>, vector<2x8x8xf32> -> vector<2x8x8xf32>
    "tpu.trace_stop"() : () -> ()
    %152 = vector.shape_cast %151 : vector<2x8x8xf32> to vector<16x8xf32>
    %153 = tpu.concatenate %68, %96, %124, %152 in 1 : vector<16x8xf32>, vector<16x8xf32>, vector<16x8xf32>, vector<16x8xf32> -> vector<16x32xf32>
    %c0_44 = arith.constant 0 : index
    %c0_45 = arith.constant 0 : index
    %c0_46 = arith.constant 0 : index
    %154 = vector.load %arg9[%c0_44, %c0_45, %c0_46] : memref<1x32x32xbf16, #tpu.memory_space<vmem>>, vector<1x32x32xbf16>
    %155 = vector.shape_cast %154 : vector<1x32x32xbf16> to vector<32x32xbf16>
    %156 = arith.truncf %153 : vector<16x32xf32> to vector<16x32xbf16>
    %cst_47 = arith.constant dense<0.000000e+00> : vector<16x32xf32>
    %157 = tpu.matmul %156, %155, %cst_47 {dimension_numbers = #tpu.dot_dimension_numbers<[1], [0], [0], [1], [0, 0, 1, 1], [], []>} : vector<16x32xbf16>, vector<32x32xbf16>, vector<16x32xf32> -> vector<16x32xf32>
    %158 = arith.addf %4, %157 : vector<16x32xf32>
    %c0_48 = arith.constant 0 : index
    %c0_49 = arith.constant 0 : index
    %c0_50 = arith.constant 0 : index
    %159 = vector.load %arg10[%c0_48, %c0_49, %c0_50] : memref<1x1x32xf32, #tpu.memory_space<vmem>>, vector<1x1x32xf32>
    %160 = vector.shape_cast %159 : vector<1x1x32xf32> to vector<1x32xf32>
    %161 = vector.broadcast %160 : vector<1x32xf32> to vector<16x32xf32>
    %162 = arith.addf %158, %161 : vector<16x32xf32>
    %c0_51 = arith.constant 0 : index
    %c0_52 = arith.constant 0 : index
    %c0_53 = arith.constant 0 : index
    %163 = vector.load %arg11[%c0_51, %c0_52, %c0_53] : memref<1x1x32xf32, #tpu.memory_space<vmem>>, vector<1x1x32xf32>
    %164 = vector.shape_cast %163 : vector<1x1x32xf32> to vector<1x32xf32>
    %c0_54 = arith.constant 0 : index
    %c0_55 = arith.constant 0 : index
    %c0_56 = arith.constant 0 : index
    %165 = vector.load %arg12[%c0_54, %c0_55, %c0_56] : memref<1x1x32xf32, #tpu.memory_space<vmem>>, vector<1x1x32xf32>
    %166 = vector.shape_cast %165 : vector<1x1x32xf32> to vector<1x32xf32>
    %cst_57 = arith.constant dense<0.000000e+00> : vector<16xf32>
    %167 = vector.multi_reduction <add>, %162, %cst_57 [1] : vector<16x32xf32> to vector<16xf32>
    %168 = vector.shape_cast %167 : vector<16xf32> to vector<16x1xf32>
    %cst_58 = arith.constant 3.200000e+01 : f32
    %169 = vector.broadcast %cst_58 : f32 to vector<16x1xf32>
    %170 = arith.divf %168, %169 : vector<16x1xf32>
    %171 = vector.broadcast %170 : vector<16x1xf32> to vector<16x32xf32>
    %172 = arith.subf %162, %171 : vector<16x32xf32>
    %173 = arith.mulf %172, %172 : vector<16x32xf32>
    %cst_59 = arith.constant dense<0.000000e+00> : vector<16xf32>
    %174 = vector.multi_reduction <add>, %173, %cst_59 [1] : vector<16x32xf32> to vector<16xf32>
    %175 = vector.shape_cast %174 : vector<16xf32> to vector<16x1xf32>
    %cst_60 = arith.constant 3.200000e+01 : f32
    %176 = vector.broadcast %cst_60 : f32 to vector<16x1xf32>
    %177 = arith.divf %175, %176 : vector<16x1xf32>
    %cst_61 = arith.constant 9.99999974E-6 : f32
    %178 = vector.broadcast %cst_61 : f32 to vector<16x1xf32>
    %179 = arith.addf %177, %178 : vector<16x1xf32>
    %180 = math.rsqrt %179 : vector<16x1xf32>
    %181 = vector.broadcast %180 : vector<16x1xf32> to vector<16x32xf32>
    %182 = arith.mulf %172, %181 : vector<16x32xf32>
    %183 = vector.broadcast %164 : vector<1x32xf32> to vector<16x32xf32>
    %184 = arith.mulf %182, %183 : vector<16x32xf32>
    %185 = vector.broadcast %166 : vector<1x32xf32> to vector<16x32xf32>
    %186 = arith.addf %184, %185 : vector<16x32xf32>
    %c0_62 = arith.constant 0 : index
    %c0_63 = arith.constant 0 : index
    %c0_64 = arith.constant 0 : index
    %187 = vector.load %arg13[%c0_62, %c0_63, %c0_64] : memref<1x32x128xbf16, #tpu.memory_space<vmem>>, vector<1x32x128xbf16>
    %188 = vector.shape_cast %187 : vector<1x32x128xbf16> to vector<32x128xbf16>
    %189 = arith.truncf %186 : vector<16x32xf32> to vector<16x32xbf16>
    %cst_65 = arith.constant dense<0.000000e+00> : vector<16x128xf32>
    %190 = tpu.matmul %189, %188, %cst_65 {dimension_numbers = #tpu.dot_dimension_numbers<[1], [0], [0], [1], [0, 0, 1, 1], [], []>} : vector<16x32xbf16>, vector<32x128xbf16>, vector<16x128xf32> -> vector<16x128xf32>
    %c0_66 = arith.constant 0 : index
    %c0_67 = arith.constant 0 : index
    %c0_68 = arith.constant 0 : index
    %191 = vector.load %arg14[%c0_66, %c0_67, %c0_68] : memref<1x1x128xf32, #tpu.memory_space<vmem>>, vector<1x1x128xf32>
    %192 = vector.shape_cast %191 : vector<1x1x128xf32> to vector<1x128xf32>
    %193 = vector.broadcast %192 : vector<1x128xf32> to vector<16x128xf32>
    %194 = arith.addf %190, %193 : vector<16x128xf32>
    %cst_69 = arith.constant -1.702000e+00 : f32
    %195 = vector.broadcast %cst_69 : f32 to vector<16x128xf32>
    %196 = arith.mulf %195, %194 : vector<16x128xf32>
    %197 = math.exp %196 : vector<16x128xf32>
    %cst_70 = arith.constant 1.000000e+00 : f32
    %198 = vector.broadcast %cst_70 : f32 to vector<16x128xf32>
    %199 = arith.addf %198, %197 : vector<16x128xf32>
    %cst_71 = arith.constant 1.000000e+00 : f32
    %200 = vector.broadcast %cst_71 : f32 to vector<16x128xf32>
    %201 = arith.divf %200, %199 : vector<16x128xf32>
    %202 = arith.mulf %194, %201 : vector<16x128xf32>
    %c0_72 = arith.constant 0 : index
    %c0_73 = arith.constant 0 : index
    %c0_74 = arith.constant 0 : index
    %203 = vector.load %arg15[%c0_72, %c0_73, %c0_74] : memref<1x128x32xbf16, #tpu.memory_space<vmem>>, vector<1x128x32xbf16>
    %204 = vector.shape_cast %203 : vector<1x128x32xbf16> to vector<128x32xbf16>
    %205 = arith.truncf %202 : vector<16x128xf32> to vector<16x128xbf16>
    %cst_75 = arith.constant dense<0.000000e+00> : vector<16x32xf32>
    %206 = tpu.matmul %205, %204, %cst_75 {dimension_numbers = #tpu.dot_dimension_numbers<[1], [0], [0], [1], [0, 0, 1, 1], [], []>} : vector<16x128xbf16>, vector<128x32xbf16>, vector<16x32xf32> -> vector<16x32xf32>
    %207 = arith.addf %162, %206 : vector<16x32xf32>
    %c0_76 = arith.constant 0 : index
    %c0_77 = arith.constant 0 : index
    %c0_78 = arith.constant 0 : index
    %208 = vector.load %arg16[%c0_76, %c0_77, %c0_78] : memref<1x1x32xf32, #tpu.memory_space<vmem>>, vector<1x1x32xf32>
    %209 = vector.shape_cast %208 : vector<1x1x32xf32> to vector<1x32xf32>
    %210 = vector.broadcast %209 : vector<1x32xf32> to vector<16x32xf32>
    %211 = arith.addf %207, %210 : vector<16x32xf32>
    %212 = vector.shape_cast %211 : vector<16x32xf32> to vector<2x8x32xf32>
    %c0_79 = arith.constant 0 : index
    %c0_80 = arith.constant 0 : index
    %c0_81 = arith.constant 0 : index
    %213 = vector.load %arg21[%c0_79, %c0_80, %c0_81] : memref<2x8x32xf32, #tpu.memory_space<vmem>>, vector<2x8x32xf32>
    tpu.vector_store %arg21[%c0_79, %c0_80, %c0_81], %212 {strides = array<i32>} : memref<2x8x32xf32, #tpu.memory_space<vmem>>, vector<2x8x32xf32>,
    %c1_i32 = arith.constant 1 : i32
    %214 = arith.cmpi eq, %arg1, %c1_i32 : i32
    %215 = arith.extui %214 : i1 to i32
    %c0_i32_82 = arith.constant 0 : i32
    %216 = arith.cmpi ne, %215, %c0_i32_82 : i32
    scf.if %216 {
      %c0_83 = arith.constant 0 : index
      %c0_84 = arith.constant 0 : index
      %217 = vector.load %arg4[%c0_83, %c0_84] : memref<2x8xf32, #tpu.memory_space<vmem>>, vector<2x8xf32>
      %218 = vector.shape_cast %217 : vector<2x8xf32> to vector<2x8x1xf32>
      %219 = vector.broadcast %218 : vector<2x8x1xf32> to vector<2x8x32xf32>
      %220 = arith.mulf %212, %219 : vector<2x8x32xf32>
      %cst_85 = arith.constant dense<0.000000e+00> : vector<2x32xf32>
      %221 = vector.multi_reduction <add>, %220, %cst_85 [1] : vector<2x8x32xf32> to vector<2x32xf32>
      %c0_86 = arith.constant 0 : index
      %c0_87 = arith.constant 0 : index
      %222 = vector.load %arg17[%c0_86, %c0_87] : memref<1x32xf32, #tpu.memory_space<vmem>>, vector<1x32xf32>
      %c0_88 = arith.constant 0 : index
      %c0_89 = arith.constant 0 : index
      %223 = vector.load %arg18[%c0_88, %c0_89] : memref<1x32xf32, #tpu.memory_space<vmem>>, vector<1x32xf32>
      %cst_90 = arith.constant dense<0.000000e+00> : vector<2xf32>
      %224 = vector.multi_reduction <add>, %221, %cst_90 [1] : vector<2x32xf32> to vector<2xf32>
      %225 = vector.shape_cast %224 : vector<2xf32> to vector<2x1xf32>
      %cst_91 = arith.constant 3.200000e+01 : f32
      %226 = vector.broadcast %cst_91 : f32 to vector<2x1xf32>
      %227 = arith.divf %225, %226 : vector<2x1xf32>
      %228 = vector.broadcast %227 : vector<2x1xf32> to vector<2x32xf32>
      %229 = arith.subf %221, %228 : vector<2x32xf32>
      %230 = arith.mulf %229, %229 : vector<2x32xf32>
      %cst_92 = arith.constant dense<0.000000e+00> : vector<2xf32>
      %231 = vector.multi_reduction <add>, %230, %cst_92 [1] : vector<2x32xf32> to vector<2xf32>
      %232 = vector.shape_cast %231 : vector<2xf32> to vector<2x1xf32>
      %cst_93 = arith.constant 3.200000e+01 : f32
      %233 = vector.broadcast %cst_93 : f32 to vector<2x1xf32>
      %234 = arith.divf %232, %233 : vector<2x1xf32>
      %cst_94 = arith.constant 9.99999974E-6 : f32
      %235 = vector.broadcast %cst_94 : f32 to vector<2x1xf32>
      %236 = arith.addf %234, %235 : vector<2x1xf32>
      %237 = math.rsqrt %236 : vector<2x1xf32>
      %238 = vector.broadcast %237 : vector<2x1xf32> to vector<2x32xf32>
      %239 = arith.mulf %229, %238 : vector<2x32xf32>
      %240 = vector.broadcast %222 : vector<1x32xf32> to vector<2x32xf32>
      %241 = arith.mulf %239, %240 : vector<2x32xf32>
      %242 = vector.broadcast %223 : vector<1x32xf32> to vector<2x32xf32>
      %243 = arith.addf %241, %242 : vector<2x32xf32>
      %c0_95 = arith.constant 0 : index
      %c0_96 = arith.constant 0 : index
      %244 = vector.load %arg19[%c0_95, %c0_96] : memref<32x16xbf16, #tpu.memory_space<vmem>>, vector<32x16xbf16>
      %245 = arith.truncf %243 : vector<2x32xf32> to vector<2x32xbf16>
      %cst_97 = arith.constant dense<0.000000e+00> : vector<2x16xf32>
      %246 = tpu.matmul %245, %244, %cst_97 {dimension_numbers = #tpu.dot_dimension_numbers<[1], [0], [0], [1], [0, 0, 1, 1], [], []>} : vector<2x32xbf16>, vector<32x16xbf16>, vector<2x16xf32> -> vector<2x16xf32>
      %c0_98 = arith.constant 0 : index
      %c0_99 = arith.constant 0 : index
      %247 = vector.load %arg20[%c0_98, %c0_99] : memref<2x16xf32, #tpu.memory_space<vmem>>, vector<2x16xf32>
      tpu.vector_store %arg20[%c0_98, %c0_99], %246 {strides = array<i32>} : memref<2x16xf32, #tpu.memory_space<vmem>>, vector<2x16xf32>,
    } else {
    }
    return
  }
  func.func @transform_0(%arg0: i32, %arg1: i32) -> (i32, i32, i32) {
    %c0_i32 = arith.constant 0 : i32
    %c0_i32_0 = arith.constant 0 : i32
    %c0_i32_1 = arith.constant 0 : i32
    return %arg0, %c0_i32, %c0_i32_0 : i32, i32, i32
  }
  func.func @transform_1(%arg0: i32, %arg1: i32) -> (i32, i32) {
    %c0_i32 = arith.constant 0 : i32
    %c0_i32_0 = arith.constant 0 : i32
    %c0_i32_1 = arith.constant 0 : i32
    return %c0_i32, %c0_i32_0 : i32, i32
  }
  func.func @transform_2(%arg0: i32, %arg1: i32) -> (i32, i32) {
    %c0_i32 = arith.constant 0 : i32
    %c0_i32_0 = arith.constant 0 : i32
    return %arg0, %c0_i32 : i32, i32
  }
  func.func @transform_3(%arg0: i32, %arg1: i32) -> (i32, i32, i32) {
    %c0_i32 = arith.constant 0 : i32
    %c0_i32_0 = arith.constant 0 : i32
    %c0_i32_1 = arith.constant 0 : i32
    return %arg1, %c0_i32, %c0_i32_0 : i32, i32, i32
  }
  func.func @transform_4(%arg0: i32, %arg1: i32) -> (i32, i32, i32) {
    %c0_i32 = arith.constant 0 : i32
    %c0_i32_0 = arith.constant 0 : i32
    %c0_i32_1 = arith.constant 0 : i32
    return %arg1, %c0_i32, %c0_i32_0 : i32, i32, i32
  }
  func.func @transform_5(%arg0: i32, %arg1: i32) -> (i32, i32, i32) {
    %c0_i32 = arith.constant 0 : i32
    %c0_i32_0 = arith.constant 0 : i32
    %c0_i32_1 = arith.constant 0 : i32
    return %arg1, %c0_i32, %c0_i32_0 : i32, i32, i32
  }
  func.func @transform_6(%arg0: i32, %arg1: i32) -> (i32, i32, i32) {
    %c0_i32 = arith.constant 0 : i32
    %c0_i32_0 = arith.constant 0 : i32
    %c0_i32_1 = arith.constant 0 : i32
    return %arg1, %c0_i32, %c0_i32_0 : i32, i32, i32
  }
  func.func @transform_7(%arg0: i32, %arg1: i32) -> (i32, i32, i32) {
    %c0_i32 = arith.constant 0 : i32
    %c0_i32_0 = arith.constant 0 : i32
    %c0_i32_1 = arith.constant 0 : i32
    return %arg1, %c0_i32, %c0_i32_0 : i32, i32, i32
  }
  func.func @transform_8(%arg0: i32, %arg1: i32) -> (i32, i32, i32) {
    %c0_i32 = arith.constant 0 : i32
    %c0_i32_0 = arith.constant 0 : i32
    %c0_i32_1 = arith.constant 0 : i32
    return %arg1, %c0_i32, %c0_i32_0 : i32, i32, i32
  }
  func.func @transform_9(%arg0: i32, %arg1: i32) -> (i32, i32, i32) {
    %c0_i32 = arith.constant 0 : i32
    %c0_i32_0 = arith.constant 0 : i32
    %c0_i32_1 = arith.constant 0 : i32
    return %arg1, %c0_i32, %c0_i32_0 : i32, i32, i32
  }
  func.func @transform_10(%arg0: i32, %arg1: i32) -> (i32, i32, i32) {
    %c0_i32 = arith.constant 0 : i32
    %c0_i32_0 = arith.constant 0 : i32
    %c0_i32_1 = arith.constant 0 : i32
    return %arg1, %c0_i32, %c0_i32_0 : i32, i32, i32
  }
  func.func @transform_11(%arg0: i32, %arg1: i32) -> (i32, i32, i32) {
    %c0_i32 = arith.constant 0 : i32
    %c0_i32_0 = arith.constant 0 : i32
    %c0_i32_1 = arith.constant 0 : i32
    return %arg1, %c0_i32, %c0_i32_0 : i32, i32, i32
  }
  func.func @transform_12(%arg0: i32, %arg1: i32) -> (i32, i32, i32) {
    %c0_i32 = arith.constant 0 : i32
    %c0_i32_0 = arith.constant 0 : i32
    %c0_i32_1 = arith.constant 0 : i32
    return %arg1, %c0_i32, %c0_i32_0 : i32, i32, i32
  }
  func.func @transform_13(%arg0: i32, %arg1: i32) -> (i32, i32, i32) {
    %c0_i32 = arith.constant 0 : i32
    %c0_i32_0 = arith.constant 0 : i32
    %c0_i32_1 = arith.constant 0 : i32
    return %arg1, %c0_i32, %c0_i32_0 : i32, i32, i32
  }
  func.func @transform_14(%arg0: i32, %arg1: i32) -> (i32, i32, i32) {
    %c0_i32 = arith.constant 0 : i32
    %c0_i32_0 = arith.constant 0 : i32
    %c0_i32_1 = arith.constant 0 : i32
    return %arg1, %c0_i32, %c0_i32_0 : i32, i32, i32
  }
  func.func @transform_15(%arg0: i32, %arg1: i32) -> (i32, i32) {
    %c0_i32 = arith.constant 0 : i32
    %c0_i32_0 = arith.constant 0 : i32
    %c0_i32_1 = arith.constant 0 : i32
    return %c0_i32, %c0_i32_0 : i32, i32
  }
  func.func @transform_16(%arg0: i32, %arg1: i32) -> (i32, i32) {
    %c0_i32 = arith.constant 0 : i32
    %c0_i32_0 = arith.constant 0 : i32
    %c0_i32_1 = arith.constant 0 : i32
    return %c0_i32, %c0_i32_0 : i32, i32
  }
  func.func @transform_17(%arg0: i32, %arg1: i32) -> (i32, i32) {
    %c0_i32 = arith.constant 0 : i32
    %c0_i32_0 = arith.constant 0 : i32
    %c0_i32_1 = arith.constant 0 : i32
    return %c0_i32, %c0_i32_0 : i32, i32
  }
  func.func @transform_18(%arg0: i32, %arg1: i32) -> (i32, i32) {
    %c0_i32 = arith.constant 0 : i32
    %c0_i32_0 = arith.constant 0 : i32
    return %arg0, %c0_i32 : i32, i32
  }
}

</mosaic_0001>

<llo_original>
// kernel: tpu_custom_call.1
$region0: #{tpu_custom_call.1}
  #allocation0 [shape = 'u32[]', space=smem, size = 0x4, offset = 0x4, fixed_abs, tag = 'smem constant byte address 0x4 - core index']
  #allocation1 [shape = 'u32[144,128]{1,0:T(1,128)}', space=vmem, size = 0x12000, scoped, tag = 'internal scratch']
  #allocation2 [shape = 'f32[2,8,32]{2,1,0:T(8,128)}', space=vmem, size = 0x2000, scoped, tag = 'scratch operand']
  %s0 = inlined_call_operand.vmem [shape: f32[2,8,32], index: 0, kind: input, shape index: {}]
  %s1 = inlined_call_operand.vmem [shape: f32[8,32], index: 1, kind: input, shape index: {}]
  %s2 = inlined_call_operand.vmem [shape: f32[2,8], index: 2, kind: input, shape index: {}]
  %s3 = inlined_call_operand.vmem [shape: f32[2,1,32], index: 3, kind: input, shape index: {}]
  %s4 = inlined_call_operand.vmem [shape: f32[2,1,32], index: 4, kind: input, shape index: {}]
  %s5 = inlined_call_operand.vmem [shape: bf16[2,32,96], index: 5, kind: input, shape index: {}]
  %s6 = inlined_call_operand.vmem [shape: f32[2,1,96], index: 6, kind: input, shape index: {}]
  %s7 = inlined_call_operand.vmem [shape: bf16[2,32,32], index: 7, kind: input, shape index: {}]
  %s8 = inlined_call_operand.vmem [shape: f32[2,1,32], index: 8, kind: input, shape index: {}]
  %s9 = inlined_call_operand.vmem [shape: f32[2,1,32], index: 9, kind: input, shape index: {}]
  %s10 = inlined_call_operand.vmem [shape: f32[2,1,32], index: 10, kind: input, shape index: {}]
  %s11 = inlined_call_operand.vmem [shape: bf16[2,32,128], index: 11, kind: input, shape index: {}]
  %s12 = inlined_call_operand.vmem [shape: f32[2,1,128], index: 12, kind: input, shape index: {}]
  %s13 = inlined_call_operand.vmem [shape: bf16[2,128,32], index: 13, kind: input, shape index: {}]
  %s14 = inlined_call_operand.vmem [shape: f32[2,1,32], index: 14, kind: input, shape index: {}]
  %s15 = inlined_call_operand.vmem [shape: f32[1,32], index: 15, kind: input, shape index: {}]
  %s16 = inlined_call_operand.vmem [shape: f32[1,32], index: 16, kind: input, shape index: {}]
  %s17 = inlined_call_operand.vmem [shape: bf16[32,16], index: 17, kind: input, shape index: {}]
  %s18 = inlined_call_operand.hbm [shape: f32[2,16], index: 18, kind: output, shape index: {}]
  %s19 = sld [smem:[#allocation0]]
  $region113: #{tpu_custom_call.1} parent=0
    _
  %s21 = ssub.s32 1, %s19
  %s22 = scalar_select 0, %s21, %s19
  $region1: #{tpu_custom_call.1} parent=0
    #allocation3 [shape = 'u8[1024]{0}', space=vmem, size = 0x400, scoped, tag = 'output window, operand 0, single buffered']
    #allocation4 [shape = 's32[2]{0}', space=sflag, size = 0x8, scoped, tag = 'scoped memory for tpu_custom_call.1']
    %23 = vsyncpa [#allocation4], 0
    loop: start=0, step=1, limit=4
    $region2: #{tpu_custom_call.1} parent=1 // loop_pre_header
      _
    $region3: #{tpu_custom_call.1} parent=1 // loop_header
      %s25 = sphi 0, %s29
      %p26 = scmp.ge.s32.totalorder %s25, 4
      %s32 = sphi 0, %s44
      %s33 = sphi 0, %s40
      %s34 = sphi 0, %s32
      %s35 = sphi 0, %s33
      %s36 = sphi 0, %s34
      %s37 = sphi 0, %s35
      %s47 = sphi 0, %s49
      %s50 = sphi 0, %s47
      %s51 = sphi 0, %s50
      %s67 = sphi 0, %s51
      %s71 = sphi 0, %s71
      %s73 = sphi 0, %s71
      %s74 = sphi 0, %s73
      %s88 = sphi 0, %s74
      %s94 = sphi 0, %s96
      %s97 = sphi 0, %s94
      %s98 = sphi 0, %s97
      %s114 = sphi 0, %s98
      %s120 = sphi 0, %s122
      %s123 = sphi 0, %s120
      %s124 = sphi 0, %s123
      %s140 = sphi 0, %s124
      %s146 = sphi 0, %s148
      %s149 = sphi 0, %s146
      %s150 = sphi 0, %s149
      %s166 = sphi 0, %s150
      %s172 = sphi 0, %s174
      %s175 = sphi 0, %s172
      %s176 = sphi 0, %s175
      %s192 = sphi 0, %s176
      %s198 = sphi 0, %s200
      %s201 = sphi 0, %s198
      %s202 = sphi 0, %s201
      %s218 = sphi 0, %s202
      %s224 = sphi 0, %s226
      %s227 = sphi 0, %s224
      %s228 = sphi 0, %s227
      %s244 = sphi 0, %s228
      %s250 = sphi 0, %s252
      %s253 = sphi 0, %s250
      %s254 = sphi 0, %s253
      %s270 = sphi 0, %s254
      %s276 = sphi 0, %s278
      %s279 = sphi 0, %s276
      %s280 = sphi 0, %s279
      %s296 = sphi 0, %s280
      %s302 = sphi 0, %s304
      %s305 = sphi 0, %s302
      %s306 = sphi 0, %s305
      %s322 = sphi 0, %s306
      %s328 = sphi 0, %s330
      %s331 = sphi 0, %s328
      %s332 = sphi 0, %s331
      %s348 = sphi 0, %s332
      %s354 = sphi 0, %s356
      %s357 = sphi 0, %s354
      %s358 = sphi 0, %s357
      %s374 = sphi 0, %s358
      %s380 = sphi 0, %s382
      %s383 = sphi 0, %s380
      %s384 = sphi 0, %s383
      %s400 = sphi 0, %s384
      %s406 = sphi 0, %s408
      %s409 = sphi 0, %s406
      %s410 = sphi 0, %s409
      %s426 = sphi 0, %s410
      %s430 = sphi 0, %s430
      %s432 = sphi 0, %s430
      %s433 = sphi 0, %s432
      %s447 = sphi 0, %s433
      %s451 = sphi 0, %s451
      %s453 = sphi 0, %s451
      %s454 = sphi 0, %s453
      %s468 = sphi 0, %s454
      %s472 = sphi 0, %s472
      %s474 = sphi 0, %s472
      %s475 = sphi 0, %s474
      %s489 = sphi 0, %s475
      %s495 = sphi 0, %s497
      %s498 = sphi 0, %s495
      %s499 = sphi 0, %s498
      %s515 = sphi 0, %s499
    $region4: #{tpu_custom_call.1} parent=1 // loop_header_branch
      %28 = sbr.rel (%p26) target = $region8
    $region5: #{tpu_custom_call.1} parent=1 // loop_body
      %s30 = ssub.s32 %s25, 1
      %s31 = ssub.s32 %s25, 2
      %s38 = sadd.s32 1, %s33
      %p39 = scmp.ge.s32.totalorder %s38, 2
      %s40 = scalar_select %p39, 0, %s38
      %s41 = sadd.s32 1, %s32
      %s42 = scalar_select %p39, %s41, %s32
      %p43 = scmp.ge.s32.totalorder %s42, 1
      %s44 = scalar_select %p43, 0, %s42
      %s45 = ssub.s32 %s32, %s44
      %p46 = scmp.eq.s32.totalorder %s45, 0
      %s48 = sadd.s32 %s47, 1
      %s49 = scalar_select %p46, %s47, %s48
      %p52 = pneg %p46
      %p53 = scmp.eq.s32.totalorder %s25, 1
      %p54 = por %p52, %p53
      %p55 = scmp.ne.s32.totalorder %s47, %s50
      %p56 = scmp.eq.s32.totalorder %s25, 0
      %p57 = por %p55, %p56
      %p58 = scmp.ne.s32.totalorder %s47, %s50
      %p59 = scmp.eq.s32.totalorder %s30, 1
      %p60 = por %p58, %p59
      %p61 = scmp.ne.s32.totalorder %s50, %s51
      %p62 = scmp.eq.s32.totalorder %s30, 0
      %p63 = por %p61, %p62
      %p64 = scmp.ne.s32.totalorder %s50, %s51
      %p65 = scmp.eq.s32.totalorder %s31, 1
      %p66 = por %p64, %p65
      %p68 = scmp.ne.s32.totalorder %s51, %s67
      %p69 = scmp.eq.s32.totalorder %s31, 0
      %p70 = por %p68, %p69
      %s72 = sadd.s32 %s71, 1
      %p75 = scmp.eq.s32.totalorder %s25, 1
      %p76 = scmp.ne.s32.totalorder %s71, %s73
      %p77 = scmp.eq.s32.totalorder %s25, 0
      %p78 = por %p76, %p77
      %p79 = scmp.ne.s32.totalorder %s71, %s73
      %p80 = scmp.eq.s32.totalorder %s30, 1
      %p81 = por %p79, %p80
      %p82 = scmp.ne.s32.totalorder %s73, %s74
      %p83 = scmp.eq.s32.totalorder %s30, 0
      %p84 = por %p82, %p83
      %p85 = scmp.ne.s32.totalorder %s73, %s74
      %p86 = scmp.eq.s32.totalorder %s31, 1
      %p87 = por %p85, %p86
      %p89 = scmp.ne.s32.totalorder %s74, %s88
      %p90 = scmp.eq.s32.totalorder %s31, 0
      %p91 = por %p89, %p90
      %s92 = ssub.s32 %s32, %s44
      %p93 = scmp.eq.s32.totalorder %s92, 0
      %s95 = sadd.s32 %s94, 1
      %s96 = scalar_select %p93, %s94, %s95
      %p99 = pneg %p93
      %p100 = scmp.eq.s32.totalorder %s25, 1
      %p101 = por %p99, %p100
      %p102 = scmp.ne.s32.totalorder %s94, %s97
      %p103 = scmp.eq.s32.totalorder %s25, 0
      %p104 = por %p102, %p103
      %p105 = scmp.ne.s32.totalorder %s94, %s97
      %p106 = scmp.eq.s32.totalorder %s30, 1
      %p107 = por %p105, %p106
      %p108 = scmp.ne.s32.totalorder %s97, %s98
      %p109 = scmp.eq.s32.totalorder %s30, 0
      %p110 = por %p108, %p109
      %p111 = scmp.ne.s32.totalorder %s97, %s98
      %p112 = scmp.eq.s32.totalorder %s31, 1
      %p113 = por %p111, %p112
      %p115 = scmp.ne.s32.totalorder %s98, %s114
      %p116 = scmp.eq.s32.totalorder %s31, 0
      %p117 = por %p115, %p116
      %s118 = ssub.s32 %s33, %s40
      %p119 = scmp.eq.s32.totalorder %s118, 0
      %s121 = sadd.s32 %s120, 1
      %s122 = scalar_select %p119, %s120, %s121
      %p125 = pneg %p119
      %p126 = scmp.eq.s32.totalorder %s25, 1
      %p127 = por %p125, %p126
      %p128 = scmp.ne.s32.totalorder %s120, %s123
      %p129 = scmp.eq.s32.totalorder %s25, 0
      %p130 = por %p128, %p129
      %p131 = scmp.ne.s32.totalorder %s120, %s123
      %p132 = scmp.eq.s32.totalorder %s30, 1
      %p133 = por %p131, %p132
      %p134 = scmp.ne.s32.totalorder %s123, %s124
      %p135 = scmp.eq.s32.totalorder %s30, 0
      %p136 = por %p134, %p135
      %p137 = scmp.ne.s32.totalorder %s123, %s124
      %p138 = scmp.eq.s32.totalorder %s31, 1
      %p139 = por %p137, %p138
      %p141 = scmp.ne.s32.totalorder %s124, %s140
      %p142 = scmp.eq.s32.totalorder %s31, 0
      %p143 = por %p141, %p142
      %s144 = ssub.s32 %s33, %s40
      %p145 = scmp.eq.s32.totalorder %s144, 0
      %s147 = sadd.s32 %s146, 1
      %s148 = scalar_select %p145, %s146, %s147
      %p151 = pneg %p145
      %p152 = scmp.eq.s32.totalorder %s25, 1
      %p153 = por %p151, %p152
      %p154 = scmp.ne.s32.totalorder %s146, %s149
      %p155 = scmp.eq.s32.totalorder %s25, 0
      %p156 = por %p154, %p155
      %p157 = scmp.ne.s32.totalorder %s146, %s149
      %p158 = scmp.eq.s32.totalorder %s30, 1
      %p159 = por %p157, %p158
      %p160 = scmp.ne.s32.totalorder %s149, %s150
      %p161 = scmp.eq.s32.totalorder %s30, 0
      %p162 = por %p160, %p161
      %p163 = scmp.ne.s32.totalorder %s149, %s150
      %p164 = scmp.eq.s32.totalorder %s31, 1
      %p165 = por %p163, %p164
      %p167 = scmp.ne.s32.totalorder %s150, %s166
      %p168 = scmp.eq.s32.totalorder %s31, 0
      %p169 = por %p167, %p168
      %s170 = ssub.s32 %s33, %s40
      %p171 = scmp.eq.s32.totalorder %s170, 0
      %s173 = sadd.s32 %s172, 1
      %s174 = scalar_select %p171, %s172, %s173
      %p177 = pneg %p171
      %p178 = scmp.eq.s32.totalorder %s25, 1
      %p179 = por %p177, %p178
      %p180 = scmp.ne.s32.totalorder %s172, %s175
      %p181 = scmp.eq.s32.totalorder %s25, 0
      %p182 = por %p180, %p181
      %p183 = scmp.ne.s32.totalorder %s172, %s175
      %p184 = scmp.eq.s32.totalorder %s30, 1
      %p185 = por %p183, %p184
      %p186 = scmp.ne.s32.totalorder %s175, %s176
      %p187 = scmp.eq.s32.totalorder %s30, 0
      %p188 = por %p186, %p187
      %p189 = scmp.ne.s32.totalorder %s175, %s176
      %p190 = scmp.eq.s32.totalorder %s31, 1
      %p191 = por %p189, %p190
      %p193 = scmp.ne.s32.totalorder %s176, %s192
      %p194 = scmp.eq.s32.totalorder %s31, 0
      %p195 = por %p193, %p194
      %s196 = ssub.s32 %s33, %s40
      %p197 = scmp.eq.s32.totalorder %s196, 0
      %s199 = sadd.s32 %s198, 1
      %s200 = scalar_select %p197, %s198, %s199
      %p203 = pneg %p197
      %p204 = scmp.eq.s32.totalorder %s25, 1
      %p205 = por %p203, %p204
      %p206 = scmp.ne.s32.totalorder %s198, %s201
      %p207 = scmp.eq.s32.totalorder %s25, 0
      %p208 = por %p206, %p207
      %p209 = scmp.ne.s32.totalorder %s198, %s201
      %p210 = scmp.eq.s32.totalorder %s30, 1
      %p211 = por %p209, %p210
      %p212 = scmp.ne.s32.totalorder %s201, %s202
      %p213 = scmp.eq.s32.totalorder %s30, 0
      %p214 = por %p212, %p213
      %p215 = scmp.ne.s32.totalorder %s201, %s202
      %p216 = scmp.eq.s32.totalorder %s31, 1
      %p217 = por %p215, %p216
      %p219 = scmp.ne.s32.totalorder %s202, %s218
      %p220 = scmp.eq.s32.totalorder %s31, 0
      %p221 = por %p219, %p220
      %s222 = ssub.s32 %s33, %s40
      %p223 = scmp.eq.s32.totalorder %s222, 0
      %s225 = sadd.s32 %s224, 1
      %s226 = scalar_select %p223, %s224, %s225
      %p229 = pneg %p223
      %p230 = scmp.eq.s32.totalorder %s25, 1
      %p231 = por %p229, %p230
      %p232 = scmp.ne.s32.totalorder %s224, %s227
      %p233 = scmp.eq.s32.totalorder %s25, 0
      %p234 = por %p232, %p233
      %p235 = scmp.ne.s32.totalorder %s224, %s227
      %p236 = scmp.eq.s32.totalorder %s30, 1
      %p237 = por %p235, %p236
      %p238 = scmp.ne.s32.totalorder %s227, %s228
      %p239 = scmp.eq.s32.totalorder %s30, 0
      %p240 = por %p238, %p239
      %p241 = scmp.ne.s32.totalorder %s227, %s228
      %p242 = scmp.eq.s32.totalorder %s31, 1
      %p243 = por %p241, %p242
      %p245 = scmp.ne.s32.totalorder %s228, %s244
      %p246 = scmp.eq.s32.totalorder %s31, 0
      %p247 = por %p245, %p246
      %s248 = ssub.s32 %s33, %s40
      %p249 = scmp.eq.s32.totalorder %s248, 0
      %s251 = sadd.s32 %s250, 1
      %s252 = scalar_select %p249, %s250, %s251
      %p255 = pneg %p249
      %p256 = scmp.eq.s32.totalorder %s25, 1
      %p257 = por %p255, %p256
      %p258 = scmp.ne.s32.totalorder %s250, %s253
      %p259 = scmp.eq.s32.totalorder %s25, 0
      %p260 = por %p258, %p259
      %p261 = scmp.ne.s32.totalorder %s250, %s253
      %p262 = scmp.eq.s32.totalorder %s30, 1
      %p263 = por %p261, %p262
      %p264 = scmp.ne.s32.totalorder %s253, %s254
      %p265 = scmp.eq.s32.totalorder %s30, 0
      %p266 = por %p264, %p265
      %p267 = scmp.ne.s32.totalorder %s253, %s254
      %p268 = scmp.eq.s32.totalorder %s31, 1
      %p269 = por %p267, %p268
      %p271 = scmp.ne.s32.totalorder %s254, %s270
      %p272 = scmp.eq.s32.totalorder %s31, 0
      %p273 = por %p271, %p272
      %s274 = ssub.s32 %s33, %s40
      %p275 = scmp.eq.s32.totalorder %s274, 0
      %s277 = sadd.s32 %s276, 1
      %s278 = scalar_select %p275, %s276, %s277
      %p281 = pneg %p275
      %p282 = scmp.eq.s32.totalorder %s25, 1
      %p283 = por %p281, %p282
      %p284 = scmp.ne.s32.totalorder %s276, %s279
      %p285 = scmp.eq.s32.totalorder %s25, 0
      %p286 = por %p284, %p285
      %p287 = scmp.ne.s32.totalorder %s276, %s279
      %p288 = scmp.eq.s32.totalorder %s30, 1
      %p289 = por %p287, %p288
      %p290 = scmp.ne.s32.totalorder %s279, %s280
      %p291 = scmp.eq.s32.totalorder %s30, 0
      %p292 = por %p290, %p291
      %p293 = scmp.ne.s32.totalorder %s279, %s280
      %p294 = scmp.eq.s32.totalorder %s31, 1
      %p295 = por %p293, %p294
      %p297 = scmp.ne.s32.totalorder %s280, %s296
      %p298 = scmp.eq.s32.totalorder %s31, 0
      %p299 = por %p297, %p298
      %s300 = ssub.s32 %s33, %s40
      %p301 = scmp.eq.s32.totalorder %s300, 0
      %s303 = sadd.s32 %s302, 1
      %s304 = scalar_select %p301, %s302, %s303
      %p307 = pneg %p301
      %p308 = scmp.eq.s32.totalorder %s25, 1
      %p309 = por %p307, %p308
      %p310 = scmp.ne.s32.totalorder %s302, %s305
      %p311 = scmp.eq.s32.totalorder %s25, 0
      %p312 = por %p310, %p311
      %p313 = scmp.ne.s32.totalorder %s302, %s305
      %p314 = scmp.eq.s32.totalorder %s30, 1
      %p315 = por %p313, %p314
      %p316 = scmp.ne.s32.totalorder %s305, %s306
      %p317 = scmp.eq.s32.totalorder %s30, 0
      %p318 = por %p316, %p317
      %p319 = scmp.ne.s32.totalorder %s305, %s306
      %p320 = scmp.eq.s32.totalorder %s31, 1
      %p321 = por %p319, %p320
      %p323 = scmp.ne.s32.totalorder %s306, %s322
      %p324 = scmp.eq.s32.totalorder %s31, 0
      %p325 = por %p323, %p324
      %s326 = ssub.s32 %s33, %s40
      %p327 = scmp.eq.s32.totalorder %s326, 0
      %s329 = sadd.s32 %s328, 1
      %s330 = scalar_select %p327, %s328, %s329
      %p333 = pneg %p327
      %p334 = scmp.eq.s32.totalorder %s25, 1
      %p335 = por %p333, %p334
      %p336 = scmp.ne.s32.totalorder %s328, %s331
      %p337 = scmp.eq.s32.totalorder %s25, 0
      %p338 = por %p336, %p337
      %p339 = scmp.ne.s32.totalorder %s328, %s331
      %p340 = scmp.eq.s32.totalorder %s30, 1
      %p341 = por %p339, %p340
      %p342 = scmp.ne.s32.totalorder %s331, %s332
      %p343 = scmp.eq.s32.totalorder %s30, 0
      %p344 = por %p342, %p343
      %p345 = scmp.ne.s32.totalorder %s331, %s332
      %p346 = scmp.eq.s32.totalorder %s31, 1
      %p347 = por %p345, %p346
      %p349 = scmp.ne.s32.totalorder %s332, %s348
      %p350 = scmp.eq.s32.totalorder %s31, 0
      %p351 = por %p349, %p350
      %s352 = ssub.s32 %s33, %s40
      %p353 = scmp.eq.s32.totalorder %s352, 0
      %s355 = sadd.s32 %s354, 1
      %s356 = scalar_select %p353, %s354, %s355
      %p359 = pneg %p353
      %p360 = scmp.eq.s32.totalorder %s25, 1
      %p361 = por %p359, %p360
      %p362 = scmp.ne.s32.totalorder %s354, %s357
      %p363 = scmp.eq.s32.totalorder %s25, 0
      %p364 = por %p362, %p363
      %p365 = scmp.ne.s32.totalorder %s354, %s357
      %p366 = scmp.eq.s32.totalorder %s30, 1
      %p367 = por %p365, %p366
      %p368 = scmp.ne.s32.totalorder %s357, %s358
      %p369 = scmp.eq.s32.totalorder %s30, 0
      %p370 = por %p368, %p369
      %p371 = scmp.ne.s32.totalorder %s357, %s358
      %p372 = scmp.eq.s32.totalorder %s31, 1
      %p373 = por %p371, %p372
      %p375 = scmp.ne.s32.totalorder %s358, %s374
      %p376 = scmp.eq.s32.totalorder %s31, 0
      %p377 = por %p375, %p376
      %s378 = ssub.s32 %s33, %s40
      %p379 = scmp.eq.s32.totalorder %s378, 0
      %s381 = sadd.s32 %s380, 1
      %s382 = scalar_select %p379, %s380, %s381
      %p385 = pneg %p379
      %p386 = scmp.eq.s32.totalorder %s25, 1
      %p387 = por %p385, %p386
      %p388 = scmp.ne.s32.totalorder %s380, %s383
      %p389 = scmp.eq.s32.totalorder %s25, 0
      %p390 = por %p388, %p389
      %p391 = scmp.ne.s32.totalorder %s380, %s383
      %p392 = scmp.eq.s32.totalorder %s30, 1
      %p393 = por %p391, %p392
      %p394 = scmp.ne.s32.totalorder %s383, %s384
      %p395 = scmp.eq.s32.totalorder %s30, 0
      %p396 = por %p394, %p395
      %p397 = scmp.ne.s32.totalorder %s383, %s384
      %p398 = scmp.eq.s32.totalorder %s31, 1
      %p399 = por %p397, %p398
      %p401 = scmp.ne.s32.totalorder %s384, %s400
      %p402 = scmp.eq.s32.totalorder %s31, 0
      %p403 = por %p401, %p402
      %s404 = ssub.s32 %s33, %s40
      %p405 = scmp.eq.s32.totalorder %s404, 0
      %s407 = sadd.s32 %s406, 1
      %s408 = scalar_select %p405, %s406, %s407
      %p411 = pneg %p405
      %p412 = scmp.eq.s32.totalorder %s25, 1
      %p413 = por %p411, %p412
      %p414 = scmp.ne.s32.totalorder %s406, %s409
      %p415 = scmp.eq.s32.totalorder %s25, 0
      %p416 = por %p414, %p415
      %p417 = scmp.ne.s32.totalorder %s406, %s409
      %p418 = scmp.eq.s32.totalorder %s30, 1
      %p419 = por %p417, %p418
      %p420 = scmp.ne.s32.totalorder %s409, %s410
      %p421 = scmp.eq.s32.totalorder %s30, 0
      %p422 = por %p420, %p421
      %p423 = scmp.ne.s32.totalorder %s409, %s410
      %p424 = scmp.eq.s32.totalorder %s31, 1
      %p425 = por %p423, %p424
      %p427 = scmp.ne.s32.totalorder %s410, %s426
      %p428 = scmp.eq.s32.totalorder %s31, 0
      %p429 = por %p427, %p428
      %s431 = sadd.s32 %s430, 1
      %p434 = scmp.eq.s32.totalorder %s25, 1
      %p435 = scmp.ne.s32.totalorder %s430, %s432
      %p436 = scmp.eq.s32.totalorder %s25, 0
      %p437 = por %p435, %p436
      %p438 = scmp.ne.s32.totalorder %s430, %s432
      %p439 = scmp.eq.s32.totalorder %s30, 1
      %p440 = por %p438, %p439
      %p441 = scmp.ne.s32.totalorder %s432, %s433
      %p442 = scmp.eq.s32.totalorder %s30, 0
      %p443 = por %p441, %p442
      %p444 = scmp.ne.s32.totalorder %s432, %s433
      %p445 = scmp.eq.s32.totalorder %s31, 1
      %p446 = por %p444, %p445
      %p448 = scmp.ne.s32.totalorder %s433, %s447
      %p449 = scmp.eq.s32.totalorder %s31, 0
      %p450 = por %p448, %p449
      %s452 = sadd.s32 %s451, 1
      %p455 = scmp.eq.s32.totalorder %s25, 1
      %p456 = scmp.ne.s32.totalorder %s451, %s453
      %p457 = scmp.eq.s32.totalorder %s25, 0
      %p458 = por %p456, %p457
      %p459 = scmp.ne.s32.totalorder %s451, %s453
      %p460 = scmp.eq.s32.totalorder %s30, 1
      %p461 = por %p459, %p460
      %p462 = scmp.ne.s32.totalorder %s453, %s454
      %p463 = scmp.eq.s32.totalorder %s30, 0
      %p464 = por %p462, %p463
      %p465 = scmp.ne.s32.totalorder %s453, %s454
      %p466 = scmp.eq.s32.totalorder %s31, 1
      %p467 = por %p465, %p466
      %p469 = scmp.ne.s32.totalorder %s454, %s468
      %p470 = scmp.eq.s32.totalorder %s31, 0
      %p471 = por %p469, %p470
      %s473 = sadd.s32 %s472, 1
      %p476 = scmp.eq.s32.totalorder %s25, 1
      %p477 = scmp.ne.s32.totalorder %s472, %s474
      %p478 = scmp.eq.s32.totalorder %s25, 0
      %p479 = por %p477, %p478
      %p480 = scmp.ne.s32.totalorder %s472, %s474
      %p481 = scmp.eq.s32.totalorder %s30, 1
      %p482 = por %p480, %p481
      %p483 = scmp.ne.s32.totalorder %s474, %s475
      %p484 = scmp.eq.s32.totalorder %s30, 0
      %p485 = por %p483, %p484
      %p486 = scmp.ne.s32.totalorder %s474, %s475
      %p487 = scmp.eq.s32.totalorder %s31, 1
      %p488 = por %p486, %p487
      %p490 = scmp.ne.s32.totalorder %s475, %s489
      %p491 = scmp.eq.s32.totalorder %s31, 0
      %p492 = por %p490, %p491
      %s493 = ssub.s32 %s32, %s44
      %p494 = scmp.eq.s32.totalorder %s493, 0
      %s496 = sadd.s32 %s495, 1
      %s497 = scalar_select %p494, %s495, %s496
      %p500 = pneg %p494
      %p501 = scmp.eq.s32.totalorder %s25, 1
      %p502 = por %p500, %p501
      %p503 = scmp.ne.s32.totalorder %s495, %s498
      %p504 = scmp.eq.s32.totalorder %s25, 0
      %p505 = por %p503, %p504
      %p506 = scmp.ne.s32.totalorder %s495, %s498
      %p507 = scmp.eq.s32.totalorder %s30, 1
      %p508 = por %p506, %p507
      %p509 = scmp.ne.s32.totalorder %s498, %s499
      %p510 = scmp.eq.s32.totalorder %s30, 0
      %p511 = por %p509, %p510
      %p512 = scmp.ne.s32.totalorder %s498, %s499
      %p513 = scmp.eq.s32.totalorder %s31, 1
      %p514 = por %p512, %p513
      %p516 = scmp.ne.s32.totalorder %s499, %s515
      %p517 = scmp.eq.s32.totalorder %s31, 0
      %p518 = por %p516, %p517
      %p519 = scmp.le.s32.totalorder 1, %s25
      %p520 = scmp.lt.s32.totalorder %s25, 3
      %p521 = pnand %p519, %p520
      %p522 = pneg %p521
      // Predicated region
      $region9: #{tpu_custom_call.1} parent=5 // pred_check
        _
      $region10: #{tpu_custom_call.1} parent=5 // pred_check_branch
        %524 = sbr.rel (%p521) target = $region12
      $region11: #{tpu_custom_call.1} parent=5 // pred_region
        %s525 = ssub.s32 %s25, 1
        // Predicated region
        $region13: #{tpu_custom_call.1} parent=11 // pred_check
          %p526 = pneg %p63
        $region14: #{tpu_custom_call.1} parent=11 // pred_check_branch
          %528 = sbr.rel (%p526) target = $region16
        $region15: #{tpu_custom_call.1} parent=11 // pred_region
          %s529 = smul.u32 2, %s34
          %p530 = scmp.lt.s32.totalorder %s529, 1
          %s531 = scalar_select %p530, %s529, 1
          %s532 = smul.addr %s531, 8
          %s533 = scalar_lea.vmem %s0, %s532
          %s534 = smul.u32 2, %s34
        $region16: #{tpu_custom_call.1} parent=11 // pred_fallthru
          _
        // Predicated region
        $region17: #{tpu_custom_call.1} parent=11 // pred_check
          %p535 = pneg %p84
        $region18: #{tpu_custom_call.1} parent=11 // pred_check_branch
          %537 = sbr.rel (%p535) target = $region20
        $region19: #{tpu_custom_call.1} parent=11 // pred_region
          _
        $region20: #{tpu_custom_call.1} parent=11 // pred_fallthru
          _
        // Predicated region
        $region21: #{tpu_custom_call.1} parent=11 // pred_check
          %p538 = pneg %p110
        $region22: #{tpu_custom_call.1} parent=11 // pred_check_branch
          %540 = sbr.rel (%p538) target = $region24
        $region23: #{tpu_custom_call.1} parent=11 // pred_region
          %p541 = scmp.lt.s32.totalorder %s34, 0
          %s542 = scalar_select %p541, %s34, 0
          %s543 = smul.addr %s542, 2
          %s544 = scalar_lea.vmem %s2, %s543
        $region24: #{tpu_custom_call.1} parent=11 // pred_fallthru
          _
        // Predicated region
        $region25: #{tpu_custom_call.1} parent=11 // pred_check
          %p545 = pneg %p443
        $region26: #{tpu_custom_call.1} parent=11 // pred_check_branch
          %547 = sbr.rel (%p545) target = $region28
        $region27: #{tpu_custom_call.1} parent=11 // pred_region
          _
        $region28: #{tpu_custom_call.1} parent=11 // pred_fallthru
          _
        // Predicated region
        $region29: #{tpu_custom_call.1} parent=11 // pred_check
          %p548 = pneg %p464
        $region30: #{tpu_custom_call.1} parent=11 // pred_check_branch
          %550 = sbr.rel (%p548) target = $region32
        $region31: #{tpu_custom_call.1} parent=11 // pred_region
          _
        $region32: #{tpu_custom_call.1} parent=11 // pred_fallthru
          _
        // Predicated region
        $region33: #{tpu_custom_call.1} parent=11 // pred_check
          %p551 = pneg %p485
        $region34: #{tpu_custom_call.1} parent=11 // pred_check_branch
          %553 = sbr.rel (%p551) target = $region36
        $region35: #{tpu_custom_call.1} parent=11 // pred_region
          _
        $region36: #{tpu_custom_call.1} parent=11 // pred_fallthru
          _
      $region12: #{tpu_custom_call.1} parent=5 // pred_fallthru
        _
      %p554 = scmp.lt.s32.totalorder %s25, 2
      // Predicated region
      $region37: #{tpu_custom_call.1} parent=5 // pred_check
        %p555 = pneg %p554
      $region38: #{tpu_custom_call.1} parent=5 // pred_check_branch
        %557 = sbr.rel (%p555) target = $region40
      $region39: #{tpu_custom_call.1} parent=5 // pred_region
        // Predicated region
        $region41: #{tpu_custom_call.1} parent=39 // pred_check
          %p558 = pneg %p130
        $region42: #{tpu_custom_call.1} parent=39 // pred_check_branch
          %560 = sbr.rel (%p558) target = $region44
        $region43: #{tpu_custom_call.1} parent=39 // pred_region
          %p561 = scmp.lt.s32.totalorder %s33, 1
          %s562 = scalar_select %p561, %s33, 1
          %s563 = scalar_lea.vmem %s3, %s562
        $region44: #{tpu_custom_call.1} parent=39 // pred_fallthru
          _
        // Predicated region
        $region45: #{tpu_custom_call.1} parent=39 // pred_check
          %p564 = pneg %p156
        $region46: #{tpu_custom_call.1} parent=39 // pred_check_branch
          %566 = sbr.rel (%p564) target = $region48
        $region47: #{tpu_custom_call.1} parent=39 // pred_region
          %p567 = scmp.lt.s32.totalorder %s33, 1
          %s568 = scalar_select %p567, %s33, 1
          %s569 = scalar_lea.vmem %s4, %s568
        $region48: #{tpu_custom_call.1} parent=39 // pred_fallthru
          _
        // Predicated region
        $region49: #{tpu_custom_call.1} parent=39 // pred_check
          %p570 = pneg %p182
        $region50: #{tpu_custom_call.1} parent=39 // pred_check_branch
          %572 = sbr.rel (%p570) target = $region52
        $region51: #{tpu_custom_call.1} parent=39 // pred_region
          %p573 = scmp.lt.s32.totalorder %s33, 1
          %s574 = scalar_select %p573, %s33, 1
          %s575 = smul.addr %s574, 4
          %s576 = smul.addr %s575, 4
          %s577 = scalar_lea.vmem %s5, %s576
        $region52: #{tpu_custom_call.1} parent=39 // pred_fallthru
          _
        // Predicated region
        $region53: #{tpu_custom_call.1} parent=39 // pred_check
          %p578 = pneg %p208
        $region54: #{tpu_custom_call.1} parent=39 // pred_check_branch
          %580 = sbr.rel (%p578) target = $region56
        $region55: #{tpu_custom_call.1} parent=39 // pred_region
          %p581 = scmp.lt.s32.totalorder %s33, 1
          %s582 = scalar_select %p581, %s33, 1
          %s583 = scalar_lea.vmem %s6, %s582
        $region56: #{tpu_custom_call.1} parent=39 // pred_fallthru
          _
        // Predicated region
        $region57: #{tpu_custom_call.1} parent=39 // pred_check
          %p584 = pneg %p234
        $region58: #{tpu_custom_call.1} parent=39 // pred_check_branch
          %586 = sbr.rel (%p584) target = $region60
        $region59: #{tpu_custom_call.1} parent=39 // pred_region
          %p587 = scmp.lt.s32.totalorder %s33, 1
          %s588 = scalar_select %p587, %s33, 1
          %s589 = smul.addr %s588, 4
          %s590 = smul.addr %s589, 4
          %s591 = scalar_lea.vmem %s7, %s590
        $region60: #{tpu_custom_call.1} parent=39 // pred_fallthru
          _
        // Predicated region
        $region61: #{tpu_custom_call.1} parent=39 // pred_check
          %p592 = pneg %p260
        $region62: #{tpu_custom_call.1} parent=39 // pred_check_branch
          %594 = sbr.rel (%p592) target = $region64
        $region63: #{tpu_custom_call.1} parent=39 // pred_region
          %p595 = scmp.lt.s32.totalorder %s33, 1
          %s596 = scalar_select %p595, %s33, 1
          %s597 = scalar_lea.vmem %s8, %s596
        $region64: #{tpu_custom_call.1} parent=39 // pred_fallthru
          _
        // Predicated region
        $region65: #{tpu_custom_call.1} parent=39 // pred_check
          %p598 = pneg %p286
        $region66: #{tpu_custom_call.1} parent=39 // pred_check_branch
          %600 = sbr.rel (%p598) target = $region68
        $region67: #{tpu_custom_call.1} parent=39 // pred_region
          %p601 = scmp.lt.s32.totalorder %s33, 1
          %s602 = scalar_select %p601, %s33, 1
          %s603 = scalar_lea.vmem %s9, %s602
        $region68: #{tpu_custom_call.1} parent=39 // pred_fallthru
          _
        // Predicated region
        $region69: #{tpu_custom_call.1} parent=39 // pred_check
          %p604 = pneg %p312
        $region70: #{tpu_custom_call.1} parent=39 // pred_check_branch
          %606 = sbr.rel (%p604) target = $region72
        $region71: #{tpu_custom_call.1} parent=39 // pred_region
          %p607 = scmp.lt.s32.totalorder %s33, 1
          %s608 = scalar_select %p607, %s33, 1
          %s609 = scalar_lea.vmem %s10, %s608
        $region72: #{tpu_custom_call.1} parent=39 // pred_fallthru
          _
        // Predicated region
        $region73: #{tpu_custom_call.1} parent=39 // pred_check
          %p610 = pneg %p338
        $region74: #{tpu_custom_call.1} parent=39 // pred_check_branch
          %612 = sbr.rel (%p610) target = $region76
        $region75: #{tpu_custom_call.1} parent=39 // pred_region
          %p613 = scmp.lt.s32.totalorder %s33, 1
          %s614 = scalar_select %p613, %s33, 1
          %s615 = smul.addr %s614, 4
          %s616 = smul.addr %s615, 4
          %s617 = scalar_lea.vmem %s11, %s616
        $region76: #{tpu_custom_call.1} parent=39 // pred_fallthru
          _
        // Predicated region
        $region77: #{tpu_custom_call.1} parent=39 // pred_check
          %p618 = pneg %p364
        $region78: #{tpu_custom_call.1} parent=39 // pred_check_branch
          %620 = sbr.rel (%p618) target = $region80
        $region79: #{tpu_custom_call.1} parent=39 // pred_region
          %p621 = scmp.lt.s32.totalorder %s33, 1
          %s622 = scalar_select %p621, %s33, 1
          %s623 = scalar_lea.vmem %s12, %s622
        $region80: #{tpu_custom_call.1} parent=39 // pred_fallthru
          _
        // Predicated region
        $region81: #{tpu_custom_call.1} parent=39 // pred_check
          %p624 = pneg %p390
        $region82: #{tpu_custom_call.1} parent=39 // pred_check_branch
          %626 = sbr.rel (%p624) target = $region84
        $region83: #{tpu_custom_call.1} parent=39 // pred_region
          %p627 = scmp.lt.s32.totalorder %s33, 1
          %s628 = scalar_select %p627, %s33, 1
          %s629 = smul.addr %s628, 16
          %s630 = smul.addr %s629, 4
          %s631 = scalar_lea.vmem %s13, %s630
        $region84: #{tpu_custom_call.1} parent=39 // pred_fallthru
          _
        // Predicated region
        $region85: #{tpu_custom_call.1} parent=39 // pred_check
          %p632 = pneg %p416
        $region86: #{tpu_custom_call.1} parent=39 // pred_check_branch
          %634 = sbr.rel (%p632) target = $region88
        $region87: #{tpu_custom_call.1} parent=39 // pred_region
          %p635 = scmp.lt.s32.totalorder %s33, 1
          %s636 = scalar_select %p635, %s33, 1
          %s637 = scalar_lea.vmem %s14, %s636
        $region88: #{tpu_custom_call.1} parent=39 // pred_fallthru
          _
      $region40: #{tpu_custom_call.1} parent=5 // pred_fallthru
        _
      %p638 = scmp.le.s32.totalorder 1, %s25
      %p639 = scmp.lt.s32.totalorder %s25, 3
      %p640 = pnand %p638, %p639
      %p641 = pneg %p640
      // Predicated region
      $region89: #{tpu_custom_call.1} parent=5 // pred_check
        _
      $region90: #{tpu_custom_call.1} parent=5 // pred_check_branch
        %643 = sbr.rel (%p640) target = $region92
      $region91: #{tpu_custom_call.1} parent=5 // pred_region
        %s644 = ssub.s32 %s25, 1
        %s645 = smul.u32 2, %s34
        %p646 = scmp.lt.s32.totalorder %s645, 1
        %s647 = scalar_select %p646, %s645, 1
        %s648 = smul.addr %s647, 8
        %s649 = scalar_lea.vmem %s0, %s648
        %p650 = pneg %p63
        %p651 = pneg %p60
        %p652 = pneg %p84
        %p653 = pneg %p81
        %p654 = scmp.lt.s32.totalorder %s34, 0
        %s655 = scalar_select %p654, %s34, 0
        %s656 = smul.addr %s655, 2
        %s657 = scalar_lea.vmem %s2, %s656
        %p658 = pneg %p110
        %p659 = pneg %p107
        %p660 = scmp.lt.s32.totalorder %s35, 1
        %s661 = scalar_select %p660, %s35, 1
        %s662 = scalar_lea.vmem %s3, %s661
        %p663 = pneg %p136
        %p664 = pneg %p133
        %p665 = scmp.lt.s32.totalorder %s35, 1
        %s666 = scalar_select %p665, %s35, 1
        %s667 = scalar_lea.vmem %s4, %s666
        %p668 = pneg %p162
        %p669 = pneg %p159
        %p670 = scmp.lt.s32.totalorder %s35, 1
        %s671 = scalar_select %p670, %s35, 1
        %s672 = smul.addr %s671, 4
        %s673 = smul.addr %s672, 4
        %s674 = scalar_lea.vmem %s5, %s673
        %p675 = pneg %p188
        %p676 = pneg %p185
        %p677 = scmp.lt.s32.totalorder %s35, 1
        %s678 = scalar_select %p677, %s35, 1
        %s679 = scalar_lea.vmem %s6, %s678
        %p680 = pneg %p214
        %p681 = pneg %p211
        %p682 = scmp.lt.s32.totalorder %s35, 1
        %s683 = scalar_select %p682, %s35, 1
        %s684 = smul.addr %s683, 4
        %s685 = smul.addr %s684, 4
        %s686 = scalar_lea.vmem %s7, %s685
        %p687 = pneg %p240
        %p688 = pneg %p237
        %p689 = scmp.lt.s32.totalorder %s35, 1
        %s690 = scalar_select %p689, %s35, 1
        %s691 = scalar_lea.vmem %s8, %s690
        %p692 = pneg %p266
        %p693 = pneg %p263
        %p694 = scmp.lt.s32.totalorder %s35, 1
        %s695 = scalar_select %p694, %s35, 1
        %s696 = scalar_lea.vmem %s9, %s695
        %p697 = pneg %p292
        %p698 = pneg %p289
        %p699 = scmp.lt.s32.totalorder %s35, 1
        %s700 = scalar_select %p699, %s35, 1
        %s701 = scalar_lea.vmem %s10, %s700
        %p702 = pneg %p318
        %p703 = pneg %p315
        %p704 = scmp.lt.s32.totalorder %s35, 1
        %s705 = scalar_select %p704, %s35, 1
        %s706 = smul.addr %s705, 4
        %s707 = smul.addr %s706, 4
        %s708 = scalar_lea.vmem %s11, %s707
        %p709 = pneg %p344
        %p710 = pneg %p341
        %p711 = scmp.lt.s32.totalorder %s35, 1
        %s712 = scalar_select %p711, %s35, 1
        %s713 = scalar_lea.vmem %s12, %s712
        %p714 = pneg %p370
        %p715 = pneg %p367
        %p716 = scmp.lt.s32.totalorder %s35, 1
        %s717 = scalar_select %p716, %s35, 1
        %s718 = smul.addr %s717, 16
        %s719 = smul.addr %s718, 4
        %s720 = scalar_lea.vmem %s13, %s719
        %p721 = pneg %p396
        %p722 = pneg %p393
        %p723 = scmp.lt.s32.totalorder %s35, 1
        %s724 = scalar_select %p723, %s35, 1
        %s725 = scalar_lea.vmem %s14, %s724
        %p726 = pneg %p422
        %p727 = pneg %p419
        %p728 = pneg %p443
        %p729 = pneg %p440
        %p730 = pneg %p464
        %p731 = pneg %p461
        %p732 = pneg %p485
        %p733 = pneg %p482
        %p734 = pneg %p511
        %p735 = pneg %p508
        %s736 = smul.u32 2, %s34
        %p737 = scmp.lt.s32.totalorder %s736, 1
        %s738 = scalar_select %p737, %s736, 1
        %s739 = smul.addr %s738, 8
        %s740 = scalar_lea.vmem %s0, %s739
        %s741 = smul.u32 2, %s34
        %p742 = scmp.lt.s32.totalorder %s34, 0
        %s743 = scalar_select %p742, %s34, 0
        %s744 = smul.addr %s743, 2
        %s745 = scalar_lea.vmem %s2, %s744
        %p746 = scmp.lt.s32.totalorder %s35, 1
        %s747 = scalar_select %p746, %s35, 1
        %s748 = scalar_lea.vmem %s3, %s747
        %p749 = scmp.lt.s32.totalorder %s35, 1
        %s750 = scalar_select %p749, %s35, 1
        %s751 = scalar_lea.vmem %s4, %s750
        %p752 = scmp.lt.s32.totalorder %s35, 1
        %s753 = scalar_select %p752, %s35, 1
        %s754 = smul.addr %s753, 4
        %s755 = smul.addr %s754, 4
        %s756 = scalar_lea.vmem %s5, %s755
        %p757 = scmp.lt.s32.totalorder %s35, 1
        %s758 = scalar_select %p757, %s35, 1
        %s759 = scalar_lea.vmem %s6, %s758
        %p760 = scmp.lt.s32.totalorder %s35, 1
        %s761 = scalar_select %p760, %s35, 1
        %s762 = smul.addr %s761, 4
        %s763 = smul.addr %s762, 4
        %s764 = scalar_lea.vmem %s7, %s763
        %p765 = scmp.lt.s32.totalorder %s35, 1
        %s766 = scalar_select %p765, %s35, 1
        %s767 = scalar_lea.vmem %s8, %s766
        %p768 = scmp.lt.s32.totalorder %s35, 1
        %s769 = scalar_select %p768, %s35, 1
        %s770 = scalar_lea.vmem %s9, %s769
        %p771 = scmp.lt.s32.totalorder %s35, 1
        %s772 = scalar_select %p771, %s35, 1
        %s773 = scalar_lea.vmem %s10, %s772
        %p774 = scmp.lt.s32.totalorder %s35, 1
        %s775 = scalar_select %p774, %s35, 1
        %s776 = smul.addr %s775, 4
        %s777 = smul.addr %s776, 4
        %s778 = scalar_lea.vmem %s11, %s777
        %p779 = scmp.lt.s32.totalorder %s35, 1
        %s780 = scalar_select %p779, %s35, 1
        %s781 = scalar_lea.vmem %s12, %s780
        %p782 = scmp.lt.s32.totalorder %s35, 1
        %s783 = scalar_select %p782, %s35, 1
        %s784 = smul.addr %s783, 16
        %s785 = smul.addr %s784, 4
        %s786 = scalar_lea.vmem %s13, %s785
        %p787 = scmp.lt.s32.totalorder %s35, 1
        %s788 = scalar_select %p787, %s35, 1
        %s789 = scalar_lea.vmem %s14, %s788
        %p791 = scmp.eq.s32.totalorder %s35, 0
        // Predicated region
        $region93: #{tpu_custom_call.1} parent=91 // pred_check
          %p792 = pneg %p791
        $region94: #{tpu_custom_call.1} parent=91 // pred_check_branch
          %794 = sbr.rel (%p792) target = $region96
        $region95: #{tpu_custom_call.1} parent=91 // pred_region
          %v795 = vld [vmem:[%s740] sm:$0xff]
          %v796 = vld [vmem:[%s740 + $0x8] sm:$0xff]
          %v797 = vld [vmem:[%s1] sm:$0xff]
          %v798 = vadd.f32 %v795, %v797
          %v799 = vadd.f32 %v796, %v797
          %vm800 = vcmask 261120
          %801 = vst.msk [vmem:[#allocation2] sm:$0xff] %vm800, %v798
          %802 = vst.msk [vmem:[#allocation2 + $0x8] sm:$0xff] %vm800, %v799
        $region96: #{tpu_custom_call.1} parent=91 // pred_fallthru
          _
        %v803 = vld [vmem:[#allocation2] sm:$0xff]
        %v804 = vld [vmem:[#allocation2 + $0x8] sm:$0xff]
        %v805 = vld [vmem:[%s748] sm:$0x1]
        %v806 = vld [vmem:[%s751] sm:$0x1]
        %vm807 = vcmask 261120
        %v808 = vsel %vm807, %v803, 0.0
        %809 = vadd.xlane.f32.xlu0 %v808
        %v810 = vpop.xlane.xlu0 %809
        %v811 = vsel %vm807, %v804, 0.0
        %812 = vadd.xlane.f32.xlu0 %v811
        %v813 = vpop.xlane.xlu0 %812
        %v814 = vrcp.pop 32.0
        %v815 = vmul.f32 %v810, %v814
        %v816 = vmul.f32 %v813, %v814
        %v817 = vsub.f32 %v803, %v815
        %v818 = vsub.f32 %v804, %v816
        %v819 = vmul.f32 %v817, %v817
        %v820 = vmul.f32 %v818, %v818
        %v821 = vsel %vm807, %v819, 0.0
        %822 = vadd.xlane.f32.xlu0 %v821
        %v823 = vpop.xlane.xlu0 %822
        %v824 = vsel %vm807, %v820, 0.0
        %825 = vadd.xlane.f32.xlu0 %v824
        %v826 = vpop.xlane.xlu0 %825
        %v827 = vmul.f32 %v823, %v814
        %v828 = vmul.f32 %v826, %v814
        %v829 = vadd.f32 %v827, 1e-05
        %v830 = vadd.f32 %v828, 1e-05
        %v831 = vrsqrt.pop %v829
        %v832 = vrsqrt.pop %v830
        %v833 = vmul.f32 %v817, %v831
        %v834 = vmul.f32 %v818, %v832
        %v836 = vlaneseq
        %v837 = vshrl.u32 %v836, 7
        %v838 = vsub.s32 0, %v837
        %v839 = vrot.slane %v805, %v838
        %v841 = vmul.f32 %v833, %v839
        %v842 = vmul.f32 %v834, %v839
        %v844 = vlaneseq
        %v845 = vshrl.u32 %v844, 7
        %v846 = vsub.s32 0, %v845
        %v847 = vrot.slane %v806, %v846
        %v849 = vadd.f32 %v841, %v847
        %v850 = vadd.f32 %v842, %v847
        %v851 = vld [vmem:[%s756] sm:$0xf]
        %v852 = vld [vmem:[%s756 + $0x4] sm:$0xf]
        %v853 = vld [vmem:[%s756 + $0x8] sm:$0xf]
        %v854 = vld [vmem:[%s756 + $0xc] sm:$0xf]
        %v855 = vpack.c.bf16 %v850, %v849
        %v856 = vld [vmem:[%s759] sm:$0x1]
        %v858 = vlaneseq
        %v859 = vshrl.u32 %v858, 7
        %v860 = vsub.s32 0, %v859
        %v861 = vrot.slane %v856, %v860
        %v867 = vunpack.c.l.b16 %v851
        %v868 = vunpack.c.l.b16 %v852
        %v869 = vunpack.c.l.b16 %v853
        %v870 = vunpack.c.l.b16 %v854
        %v871 = vpack.c.b16 %v868, %v867
        %v872 = vpack.c.b16 %v870, %v869
        %v876 = vsel %vm807, %v855, 0
        %878 = vmatprep.subr.bf16.mxu0 0
        %879 = vmatpush1.bf16.msra.mxu0 0
        %880 = vmatprep.subr.bf16.mxu0 0
        %881 = vmatpush1.bf16.msra.mxu0 0
        %882 = vmatprep.subr.bf16.mxu0 0
        %883 = vmatpush1.bf16.msra.mxu0 0
        %884 = vmatprep.subr.bf16.mxu0 0
        %885 = vmatpush1.bf16.msra.mxu0 0
        %886 = vmatprep.subr.bf16.mxu0 0
        %887 = vmatpush1.bf16.msra.mxu0 0
        %888 = vmatprep.subr.bf16.mxu0 0
        %889 = vmatpush1.bf16.msra.mxu0 0
        %890 = vmatprep.subr.bf16.mxu0 0
        %891 = vmatpush1.bf16.msra.mxu0 %v872
        %892 = vmatprep.subr.bf16.mxu0 0
        %893 = vmatpush1.bf16.msra.mxu0 %v871
        %894 = vmatprep.subr.bf16.mxu0 0
        %895 = vmatpush2.bf16.msra.mxu0 0
        %896 = vmatprep.subr.bf16.mxu0 0
        %897 = vmatpush2.bf16.msra.mxu0 0
        %898 = vmatprep.subr.bf16.mxu0 0
        %899 = vmatpush2.bf16.msra.mxu0 0
        %900 = vmatprep.subr.bf16.mxu0 0
        %901 = vmatpush2.bf16.msra.mxu0 0
        %902 = vmatprep.subr.bf16.mxu0 0
        %903 = vmatpush2.bf16.msra.mxu0 0
        %904 = vmatprep.subr.bf16.mxu0 0
        %905 = vmatpush2.bf16.msra.mxu0 0
        %906 = vmatprep.subr.bf16.mxu0 0
        %907 = vmatpush2.bf16.msra.mxu0 0
        %908 = vmatprep.subr.bf16.mxu0 0
        %909 = vmatpush2.bf16.msra.mxu0 0
        %910 = vmatprep.mubr.bf16.mxu0 0
        %911 = vmatmul.mubr.bf16.gmra.mxu0 %v876
        %v912 = vpop.f32.mrf.mxu0
        %v913 = vadd.f32 %v861, %v912
        %v914 = vpop.f32.mrf.mxu0
        %v915 = vpop.f32.mrf.mxu0
        %v916 = vadd.f32 %v861, %v915
        %v917 = vpop.f32.mrf.mxu0
        %918 = vdwg.mxu0
        %v919 = vlaneseq
        %v920 = vshrl.u32 %v919, 7
        %v921 = vlaneseq
        %v922 = vand.u32 %v921, 127
        %vm923 = vcmp.le.s32.totalorder %v922, %v920
        %v924 = vpack.c.bf16 %v913, %v913
        %v925 = vpack.c.bf16 %v916, %v916
        %927 = vrot.lane.b32.xlu0 %v924, 96
        %v928 = vpop.permute.xlu0 %927
        %vm929 = vcmask 64512
        %v931 = vsel %vm929, %v924, 0
        %v934 = vsel %vm929, %v928, 0
        %936 = vmatprep.subr.bf16.mxu0 0
        %937 = vmatpush1.bf16.xpose.msra.mxu0 0
        %938 = vmatprep.subr.bf16.mxu0 0
        %939 = vmatpush1.bf16.xpose.msra.mxu0 0
        %940 = vmatprep.subr.bf16.mxu0 0
        %941 = vmatpush1.bf16.xpose.msra.mxu0 0
        %942 = vmatprep.subr.bf16.mxu0 0
        %943 = vmatpush1.bf16.xpose.msra.mxu0 0
        %944 = vmatprep.subr.bf16.mxu0 0
        %945 = vmatpush1.bf16.xpose.msra.mxu0 0
        %946 = vmatprep.subr.bf16.mxu0 0
        %947 = vmatpush1.bf16.xpose.msra.mxu0 0
        %948 = vmatprep.subr.bf16.mxu0 0
        %949 = vmatpush1.bf16.xpose.msra.mxu0 0
        %950 = vmatprep.subr.bf16.mxu0 0
        %951 = vmatpush1.bf16.xpose.msra.mxu0 %v934
        %952 = vmatprep.subr.bf16.mxu0 0
        %953 = vmatpush2.bf16.xpose.msra.mxu0 0
        %954 = vmatprep.subr.bf16.mxu0 0
        %955 = vmatpush2.bf16.xpose.msra.mxu0 0
        %956 = vmatprep.subr.bf16.mxu0 0
        %957 = vmatpush2.bf16.xpose.msra.mxu0 0
        %958 = vmatprep.subr.bf16.mxu0 0
        %959 = vmatpush2.bf16.xpose.msra.mxu0 0
        %960 = vmatprep.subr.bf16.mxu0 0
        %961 = vmatpush2.bf16.xpose.msra.mxu0 0
        %962 = vmatprep.subr.bf16.mxu0 0
        %963 = vmatpush2.bf16.xpose.msra.mxu0 0
        %964 = vmatprep.subr.bf16.mxu0 0
        %965 = vmatpush2.bf16.xpose.msra.mxu0 0
        %966 = vmatprep.subr.bf16.mxu0 0
        %967 = vmatpush2.bf16.xpose.msra.mxu0 0
        %968 = vmatprep.mubr.bf16.mxu0 0
        %969 = vmatmul.mubr.bf16.gmra.mxu0 %v931
        %v970 = vpop.f32.mrf.mxu0
        %v971 = vadd.f32 0.0, %v970
        %v972 = vpop.f32.mrf.mxu0
        %v973 = vpop.f32.mrf.mxu0
        %v974 = vpop.f32.mrf.mxu0
        %975 = vdwg.mxu0
        %977 = vrot.lane.b32.xlu0 %v925, 96
        %v978 = vpop.permute.xlu0 %977
        %v980 = vsel %vm929, %v925, 0
        %v983 = vsel %vm929, %v978, 0
        %985 = vmatprep.subr.bf16.mxu0 0
        %986 = vmatpush1.bf16.xpose.msra.mxu0 0
        %987 = vmatprep.subr.bf16.mxu0 0
        %988 = vmatpush1.bf16.xpose.msra.mxu0 0
        %989 = vmatprep.subr.bf16.mxu0 0
        %990 = vmatpush1.bf16.xpose.msra.mxu0 0
        %991 = vmatprep.subr.bf16.mxu0 0
        %992 = vmatpush1.bf16.xpose.msra.mxu0 0
        %993 = vmatprep.subr.bf16.mxu0 0
        %994 = vmatpush1.bf16.xpose.msra.mxu0 0
        %995 = vmatprep.subr.bf16.mxu0 0
        %996 = vmatpush1.bf16.xpose.msra.mxu0 0
        %997 = vmatprep.subr.bf16.mxu0 0
        %998 = vmatpush1.bf16.xpose.msra.mxu0 0
        %999 = vmatprep.subr.bf16.mxu0 0
        %1000 = vmatpush1.bf16.xpose.msra.mxu0 %v983
        %1001 = vmatprep.subr.bf16.mxu0 0
        %1002 = vmatpush2.bf16.xpose.msra.mxu0 0
        %1003 = vmatprep.subr.bf16.mxu0 0
        %1004 = vmatpush2.bf16.xpose.msra.mxu0 0
        %1005 = vmatprep.subr.bf16.mxu0 0
        %1006 = vmatpush2.bf16.xpose.msra.mxu0 0
        %1007 = vmatprep.subr.bf16.mxu0 0
        %1008 = vmatpush2.bf16.xpose.msra.mxu0 0
        %1009 = vmatprep.subr.bf16.mxu0 0
        %1010 = vmatpush2.bf16.xpose.msra.mxu0 0
        %1011 = vmatprep.subr.bf16.mxu0 0
        %1012 = vmatpush2.bf16.xpose.msra.mxu0 0
        %1013 = vmatprep.subr.bf16.mxu0 0
        %1014 = vmatpush2.bf16.xpose.msra.mxu0 0
        %1015 = vmatprep.subr.bf16.mxu0 0
        %1016 = vmatpush2.bf16.xpose.msra.mxu0 0
        %1017 = vmatprep.mubr.bf16.mxu0 0
        %1018 = vmatmul.mubr.bf16.gmra.mxu0 %v980
        %v1019 = vpop.f32.mrf.mxu0
        %v1020 = vadd.f32 0.0, %v1019
        %v1021 = vpop.f32.mrf.mxu0
        %v1022 = vpop.f32.mrf.mxu0
        %v1023 = vpop.f32.mrf.mxu0
        %1024 = vdwg.mxu0
        %v1025 = vmul.f32 %v971, 0.35355338
        %v1026 = vmul.f32 %v1020, 0.35355338
        %v1027 = vsel %vm923, 1, 0
        %vm1028 = vcmp.eq.s32.totalorder %v1027, 1
        %v1029 = vsel %vm1028, %v1025, -1e+30
        %v1030 = vsel %vm1028, %v1026, -1e+30
        %v1031 = vsel %vm929, %v1029, -inf
        %1032 = vmax.xlane.f32.xlu0 %v1031
        %v1033 = vpop.xlane.xlu0 %1032
        %v1034 = vsel %vm929, %v1030, -inf
        %1035 = vmax.xlane.f32.xlu0 %v1034
        %v1036 = vpop.xlane.xlu0 %1035
        %v1037 = vsub.f32 %v1029, %v1033
        %v1038 = vsub.f32 %v1030, %v1036
        %v1039 = vmul.f32 %v1037, 1.442695
        %v1040 = vpow.pop %v1039
        %v1041 = vmul.f32 %v1038, 1.442695
        %v1042 = vpow.pop %v1041
        %v1043 = vsel %vm929, %v1040, 0.0
        %1044 = vadd.xlane.f32.xlu0 %v1043
        %v1045 = vpop.xlane.xlu0 %1044
        %v1046 = vsel %vm929, %v1042, 0.0
        %1047 = vadd.xlane.f32.xlu0 %v1046
        %v1048 = vpop.xlane.xlu0 %1047
        %v1049 = vrcp.pop %v1045
        %v1050 = vmul.f32 %v1040, %v1049
        %v1051 = vrcp.pop %v1048
        %v1052 = vmul.f32 %v1042, %v1051
        %v1053 = vpack.c.bf16 %v1050, %v1050
        %v1054 = vpack.c.bf16 %v1052, %v1052
        %1055 = vrot.lane.b32.xlu0 %v924, 64
        %v1056 = vpop.permute.xlu0 %1055
        %v1058 = vsel %vm929, %v1053, 0
        %vm1060 = vcmask 1043456
        %v1062 = vsel %vm1060, %v1056, 0
        %1064 = vmatprep.subr.bf16.mxu0 0
        %1065 = vmatpush1.bf16.msra.mxu0 0
        %1066 = vmatprep.subr.bf16.mxu0 0
        %1067 = vmatpush1.bf16.msra.mxu0 0
        %1068 = vmatprep.subr.bf16.mxu0 0
        %1069 = vmatpush1.bf16.msra.mxu0 0
        %1070 = vmatprep.subr.bf16.mxu0 0
        %1071 = vmatpush1.bf16.msra.mxu0 0
        %1072 = vmatprep.subr.bf16.mxu0 0
        %1073 = vmatpush1.bf16.msra.mxu0 0
        %1074 = vmatprep.subr.bf16.mxu0 0
        %1075 = vmatpush1.bf16.msra.mxu0 0
        %1076 = vmatprep.subr.bf16.mxu0 0
        %1077 = vmatpush1.bf16.msra.mxu0 0
        %1078 = vmatprep.subr.bf16.mxu0 0
        %1079 = vmatpush1.bf16.msra.mxu0 %v1062
        %1080 = vmatprep.subr.bf16.mxu0 0
        %1081 = vmatpush2.bf16.msra.mxu0 0
        %1082 = vmatprep.subr.bf16.mxu0 0
        %1083 = vmatpush2.bf16.msra.mxu0 0
        %1084 = vmatprep.subr.bf16.mxu0 0
        %1085 = vmatpush2.bf16.msra.mxu0 0
        %1086 = vmatprep.subr.bf16.mxu0 0
        %1087 = vmatpush2.bf16.msra.mxu0 0
        %1088 = vmatprep.subr.bf16.mxu0 0
        %1089 = vmatpush2.bf16.msra.mxu0 0
        %1090 = vmatprep.subr.bf16.mxu0 0
        %1091 = vmatpush2.bf16.msra.mxu0 0
        %1092 = vmatprep.subr.bf16.mxu0 0
        %1093 = vmatpush2.bf16.msra.mxu0 0
        %1094 = vmatprep.subr.bf16.mxu0 0
        %1095 = vmatpush2.bf16.msra.mxu0 0
        %1096 = vmatprep.mubr.bf16.mxu0 0
        %1097 = vmatmul.mubr.bf16.gmra.mxu0 %v1058
        %v1098 = vpop.f32.mrf.mxu0
        %v1099 = vadd.f32 0.0, %v1098
        %v1100 = vpop.f32.mrf.mxu0
        %v1101 = vpop.f32.mrf.mxu0
        %v1102 = vpop.f32.mrf.mxu0
        %1103 = vdwg.mxu0
        %1104 = vrot.lane.b32.xlu0 %v925, 64
        %v1105 = vpop.permute.xlu0 %1104
        %v1107 = vsel %vm929, %v1054, 0
        %v1110 = vsel %vm1060, %v1105, 0
        %1112 = vmatprep.subr.bf16.mxu0 0
        %1113 = vmatpush1.bf16.msra.mxu0 0
        %1114 = vmatprep.subr.bf16.mxu0 0
        %1115 = vmatpush1.bf16.msra.mxu0 0
        %1116 = vmatprep.subr.bf16.mxu0 0
        %1117 = vmatpush1.bf16.msra.mxu0 0
        %1118 = vmatprep.subr.bf16.mxu0 0
        %1119 = vmatpush1.bf16.msra.mxu0 0
        %1120 = vmatprep.subr.bf16.mxu0 0
        %1121 = vmatpush1.bf16.msra.mxu0 0
        %1122 = vmatprep.subr.bf16.mxu0 0
        %1123 = vmatpush1.bf16.msra.mxu0 0
        %1124 = vmatprep.subr.bf16.mxu0 0
        %1125 = vmatpush1.bf16.msra.mxu0 0
        %1126 = vmatprep.subr.bf16.mxu0 0
        %1127 = vmatpush1.bf16.msra.mxu0 %v1110
        %1128 = vmatprep.subr.bf16.mxu0 0
        %1129 = vmatpush2.bf16.msra.mxu0 0
        %1130 = vmatprep.subr.bf16.mxu0 0
        %1131 = vmatpush2.bf16.msra.mxu0 0
        %1132 = vmatprep.subr.bf16.mxu0 0
        %1133 = vmatpush2.bf16.msra.mxu0 0
        %1134 = vmatprep.subr.bf16.mxu0 0
        %1135 = vmatpush2.bf16.msra.mxu0 0
        %1136 = vmatprep.subr.bf16.mxu0 0
        %1137 = vmatpush2.bf16.msra.mxu0 0
        %1138 = vmatprep.subr.bf16.mxu0 0
        %1139 = vmatpush2.bf16.msra.mxu0 0
        %1140 = vmatprep.subr.bf16.mxu0 0
        %1141 = vmatpush2.bf16.msra.mxu0 0
        %1142 = vmatprep.subr.bf16.mxu0 0
        %1143 = vmatpush2.bf16.msra.mxu0 0
        %1144 = vmatprep.mubr.bf16.mxu0 0
        %1145 = vmatmul.mubr.bf16.gmra.mxu0 %v1107
        %v1146 = vpop.f32.mrf.mxu0
        %v1147 = vadd.f32 0.0, %v1146
        %v1148 = vpop.f32.mrf.mxu0
        %v1149 = vpop.f32.mrf.mxu0
        %v1150 = vpop.f32.mrf.mxu0
        %1151 = vdwg.mxu0
        %1152 = vrot.lane.b32.xlu0 %v924, 120
        %v1153 = vpop.permute.xlu0 %1152
        %1154 = vrot.lane.b32.xlu0 %v924, 88
        %v1155 = vpop.permute.xlu0 %1154
        %v1157 = vsel %vm929, %v1153, 0
        %v1160 = vsel %vm929, %v1155, 0
        %1162 = vmatprep.subr.bf16.mxu0 0
        %1163 = vmatpush1.bf16.xpose.msra.mxu0 0
        %1164 = vmatprep.subr.bf16.mxu0 0
        %1165 = vmatpush1.bf16.xpose.msra.mxu0 0
        %1166 = vmatprep.subr.bf16.mxu0 0
        %1167 = vmatpush1.bf16.xpose.msra.mxu0 0
        %1168 = vmatprep.subr.bf16.mxu0 0
        %1169 = vmatpush1.bf16.xpose.msra.mxu0 0
        %1170 = vmatprep.subr.bf16.mxu0 0
        %1171 = vmatpush1.bf16.xpose.msra.mxu0 0
        %1172 = vmatprep.subr.bf16.mxu0 0
        %1173 = vmatpush1.bf16.xpose.msra.mxu0 0
        %1174 = vmatprep.subr.bf16.mxu0 0
        %1175 = vmatpush1.bf16.xpose.msra.mxu0 0
        %1176 = vmatprep.subr.bf16.mxu0 0
        %1177 = vmatpush1.bf16.xpose.msra.mxu0 %v1160
        %1178 = vmatprep.subr.bf16.mxu0 0
        %1179 = vmatpush2.bf16.xpose.msra.mxu0 0
        %1180 = vmatprep.subr.bf16.mxu0 0
        %1181 = vmatpush2.bf16.xpose.msra.mxu0 0
        %1182 = vmatprep.subr.bf16.mxu0 0
        %1183 = vmatpush2.bf16.xpose.msra.mxu0 0
        %1184 = vmatprep.subr.bf16.mxu0 0
        %1185 = vmatpush2.bf16.xpose.msra.mxu0 0
        %1186 = vmatprep.subr.bf16.mxu0 0
        %1187 = vmatpush2.bf16.xpose.msra.mxu0 0
        %1188 = vmatprep.subr.bf16.mxu0 0
        %1189 = vmatpush2.bf16.xpose.msra.mxu0 0
        %1190 = vmatprep.subr.bf16.mxu0 0
        %1191 = vmatpush2.bf16.xpose.msra.mxu0 0
        %1192 = vmatprep.subr.bf16.mxu0 0
        %1193 = vmatpush2.bf16.xpose.msra.mxu0 0
        %1194 = vmatprep.mubr.bf16.mxu0 0
        %1195 = vmatmul.mubr.bf16.gmra.mxu0 %v1157
        %v1196 = vpop.f32.mrf.mxu0
        %v1197 = vadd.f32 0.0, %v1196
        %v1198 = vpop.f32.mrf.mxu0
        %v1199 = vpop.f32.mrf.mxu0
        %v1200 = vpop.f32.mrf.mxu0
        %1201 = vdwg.mxu0
        %1202 = vrot.lane.b32.xlu0 %v925, 120
        %v1203 = vpop.permute.xlu0 %1202
        %1204 = vrot.lane.b32.xlu0 %v925, 88
        %v1205 = vpop.permute.xlu0 %1204
        %v1207 = vsel %vm929, %v1203, 0
        %v1210 = vsel %vm929, %v1205, 0
        %1212 = vmatprep.subr.bf16.mxu0 0
        %1213 = vmatpush1.bf16.xpose.msra.mxu0 0
        %1214 = vmatprep.subr.bf16.mxu0 0
        %1215 = vmatpush1.bf16.xpose.msra.mxu0 0
        %1216 = vmatprep.subr.bf16.mxu0 0
        %1217 = vmatpush1.bf16.xpose.msra.mxu0 0
        %1218 = vmatprep.subr.bf16.mxu0 0
        %1219 = vmatpush1.bf16.xpose.msra.mxu0 0
        %1220 = vmatprep.subr.bf16.mxu0 0
        %1221 = vmatpush1.bf16.xpose.msra.mxu0 0
        %1222 = vmatprep.subr.bf16.mxu0 0
        %1223 = vmatpush1.bf16.xpose.msra.mxu0 0
        %1224 = vmatprep.subr.bf16.mxu0 0
        %1225 = vmatpush1.bf16.xpose.msra.mxu0 0
        %1226 = vmatprep.subr.bf16.mxu0 0
        %1227 = vmatpush1.bf16.xpose.msra.mxu0 %v1210
        %1228 = vmatprep.subr.bf16.mxu0 0
        %1229 = vmatpush2.bf16.xpose.msra.mxu0 0
        %1230 = vmatprep.subr.bf16.mxu0 0
        %1231 = vmatpush2.bf16.xpose.msra.mxu0 0
        %1232 = vmatprep.subr.bf16.mxu0 0
        %1233 = vmatpush2.bf16.xpose.msra.mxu0 0
        %1234 = vmatprep.subr.bf16.mxu0 0
        %1235 = vmatpush2.bf16.xpose.msra.mxu0 0
        %1236 = vmatprep.subr.bf16.mxu0 0
        %1237 = vmatpush2.bf16.xpose.msra.mxu0 0
        %1238 = vmatprep.subr.bf16.mxu0 0
        %1239 = vmatpush2.bf16.xpose.msra.mxu0 0
        %1240 = vmatprep.subr.bf16.mxu0 0
        %1241 = vmatpush2.bf16.xpose.msra.mxu0 0
        %1242 = vmatprep.subr.bf16.mxu0 0
        %1243 = vmatpush2.bf16.xpose.msra.mxu0 0
        %1244 = vmatprep.mubr.bf16.mxu0 0
        %1245 = vmatmul.mubr.bf16.gmra.mxu0 %v1207
        %v1246 = vpop.f32.mrf.mxu0
        %v1247 = vadd.f32 0.0, %v1246
        %v1248 = vpop.f32.mrf.mxu0
        %v1249 = vpop.f32.mrf.mxu0
        %v1250 = vpop.f32.mrf.mxu0
        %1251 = vdwg.mxu0
        %v1252 = vmul.f32 %v1197, 0.35355338
        %v1253 = vmul.f32 %v1247, 0.35355338
        %v1254 = vsel %vm1028, %v1252, -1e+30
        %v1255 = vsel %vm1028, %v1253, -1e+30
        %v1256 = vsel %vm929, %v1254, -inf
        %1257 = vmax.xlane.f32.xlu0 %v1256
        %v1258 = vpop.xlane.xlu0 %1257
        %v1259 = vsel %vm929, %v1255, -inf
        %1260 = vmax.xlane.f32.xlu0 %v1259
        %v1261 = vpop.xlane.xlu0 %1260
        %v1262 = vsub.f32 %v1254, %v1258
        %v1263 = vsub.f32 %v1255, %v1261
        %v1264 = vmul.f32 %v1262, 1.442695
        %v1265 = vpow.pop %v1264
        %v1266 = vmul.f32 %v1263, 1.442695
        %v1267 = vpow.pop %v1266
        %v1268 = vsel %vm929, %v1265, 0.0
        %1269 = vadd.xlane.f32.xlu0 %v1268
        %v1270 = vpop.xlane.xlu0 %1269
        %v1271 = vsel %vm929, %v1267, 0.0
        %1272 = vadd.xlane.f32.xlu0 %v1271
        %v1273 = vpop.xlane.xlu0 %1272
        %v1274 = vrcp.pop %v1270
        %v1275 = vmul.f32 %v1265, %v1274
        %v1276 = vrcp.pop %v1273
        %v1277 = vmul.f32 %v1267, %v1276
        %v1278 = vpack.c.bf16 %v1275, %v1275
        %v1279 = vpack.c.bf16 %v1277, %v1277
        %1280 = vrot.lane.b32.xlu0 %v924, 56
        %v1281 = vpop.permute.xlu0 %1280
        %v1283 = vsel %vm929, %v1278, 0
        %v1286 = vsel %vm1060, %v1281, 0
        %1288 = vmatprep.subr.bf16.mxu0 0
        %1289 = vmatpush1.bf16.msra.mxu0 0
        %1290 = vmatprep.subr.bf16.mxu0 0
        %1291 = vmatpush1.bf16.msra.mxu0 0
        %1292 = vmatprep.subr.bf16.mxu0 0
        %1293 = vmatpush1.bf16.msra.mxu0 0
        %1294 = vmatprep.subr.bf16.mxu0 0
        %1295 = vmatpush1.bf16.msra.mxu0 0
        %1296 = vmatprep.subr.bf16.mxu0 0
        %1297 = vmatpush1.bf16.msra.mxu0 0
        %1298 = vmatprep.subr.bf16.mxu0 0
        %1299 = vmatpush1.bf16.msra.mxu0 0
        %1300 = vmatprep.subr.bf16.mxu0 0
        %1301 = vmatpush1.bf16.msra.mxu0 0
        %1302 = vmatprep.subr.bf16.mxu0 0
        %1303 = vmatpush1.bf16.msra.mxu0 %v1286
        %1304 = vmatprep.subr.bf16.mxu0 0
        %1305 = vmatpush2.bf16.msra.mxu0 0
        %1306 = vmatprep.subr.bf16.mxu0 0
        %1307 = vmatpush2.bf16.msra.mxu0 0
        %1308 = vmatprep.subr.bf16.mxu0 0
        %1309 = vmatpush2.bf16.msra.mxu0 0
        %1310 = vmatprep.subr.bf16.mxu0 0
        %1311 = vmatpush2.bf16.msra.mxu0 0
        %1312 = vmatprep.subr.bf16.mxu0 0
        %1313 = vmatpush2.bf16.msra.mxu0 0
        %1314 = vmatprep.subr.bf16.mxu0 0
        %1315 = vmatpush2.bf16.msra.mxu0 0
        %1316 = vmatprep.subr.bf16.mxu0 0
        %1317 = vmatpush2.bf16.msra.mxu0 0
        %1318 = vmatprep.subr.bf16.mxu0 0
        %1319 = vmatpush2.bf16.msra.mxu0 0
        %1320 = vmatprep.mubr.bf16.mxu0 0
        %1321 = vmatmul.mubr.bf16.gmra.mxu0 %v1283
        %v1322 = vpop.f32.mrf.mxu0
        %v1323 = vadd.f32 0.0, %v1322
        %v1324 = vpop.f32.mrf.mxu0
        %v1325 = vpop.f32.mrf.mxu0
        %v1326 = vpop.f32.mrf.mxu0
        %1327 = vdwg.mxu0
        %1328 = vrot.lane.b32.xlu0 %v925, 56
        %v1329 = vpop.permute.xlu0 %1328
        %v1331 = vsel %vm929, %v1279, 0
        %v1334 = vsel %vm1060, %v1329, 0
        %1336 = vmatprep.subr.bf16.mxu0 0
        %1337 = vmatpush1.bf16.msra.mxu0 0
        %1338 = vmatprep.subr.bf16.mxu0 0
        %1339 = vmatpush1.bf16.msra.mxu0 0
        %1340 = vmatprep.subr.bf16.mxu0 0
        %1341 = vmatpush1.bf16.msra.mxu0 0
        %1342 = vmatprep.subr.bf16.mxu0 0
        %1343 = vmatpush1.bf16.msra.mxu0 0
        %1344 = vmatprep.subr.bf16.mxu0 0
        %1345 = vmatpush1.bf16.msra.mxu0 0
        %1346 = vmatprep.subr.bf16.mxu0 0
        %1347 = vmatpush1.bf16.msra.mxu0 0
        %1348 = vmatprep.subr.bf16.mxu0 0
        %1349 = vmatpush1.bf16.msra.mxu0 0
        %1350 = vmatprep.subr.bf16.mxu0 0
        %1351 = vmatpush1.bf16.msra.mxu0 %v1334
        %1352 = vmatprep.subr.bf16.mxu0 0
        %1353 = vmatpush2.bf16.msra.mxu0 0
        %1354 = vmatprep.subr.bf16.mxu0 0
        %1355 = vmatpush2.bf16.msra.mxu0 0
        %1356 = vmatprep.subr.bf16.mxu0 0
        %1357 = vmatpush2.bf16.msra.mxu0 0
        %1358 = vmatprep.subr.bf16.mxu0 0
        %1359 = vmatpush2.bf16.msra.mxu0 0
        %1360 = vmatprep.subr.bf16.mxu0 0
        %1361 = vmatpush2.bf16.msra.mxu0 0
        %1362 = vmatprep.subr.bf16.mxu0 0
        %1363 = vmatpush2.bf16.msra.mxu0 0
        %1364 = vmatprep.subr.bf16.mxu0 0
        %1365 = vmatpush2.bf16.msra.mxu0 0
        %1366 = vmatprep.subr.bf16.mxu0 0
        %1367 = vmatpush2.bf16.msra.mxu0 0
        %1368 = vmatprep.mubr.bf16.mxu0 0
        %1369 = vmatmul.mubr.bf16.gmra.mxu0 %v1331
        %v1370 = vpop.f32.mrf.mxu0
        %v1371 = vadd.f32 0.0, %v1370
        %v1372 = vpop.f32.mrf.mxu0
        %v1373 = vpop.f32.mrf.mxu0
        %v1374 = vpop.f32.mrf.mxu0
        %1375 = vdwg.mxu0
        %1376 = vrot.lane.b32.xlu0 %v924, 112
        %v1377 = vpop.permute.xlu0 %1376
        %1378 = vrot.lane.b32.xlu0 %v924, 80
        %v1379 = vpop.permute.xlu0 %1378
        %v1381 = vsel %vm929, %v1377, 0
        %v1384 = vsel %vm929, %v1379, 0
        %1386 = vmatprep.subr.bf16.mxu0 0
        %1387 = vmatpush1.bf16.xpose.msra.mxu0 0
        %1388 = vmatprep.subr.bf16.mxu0 0
        %1389 = vmatpush1.bf16.xpose.msra.mxu0 0
        %1390 = vmatprep.subr.bf16.mxu0 0
        %1391 = vmatpush1.bf16.xpose.msra.mxu0 0
        %1392 = vmatprep.subr.bf16.mxu0 0
        %1393 = vmatpush1.bf16.xpose.msra.mxu0 0
        %1394 = vmatprep.subr.bf16.mxu0 0
        %1395 = vmatpush1.bf16.xpose.msra.mxu0 0
        %1396 = vmatprep.subr.bf16.mxu0 0
        %1397 = vmatpush1.bf16.xpose.msra.mxu0 0
        %1398 = vmatprep.subr.bf16.mxu0 0
        %1399 = vmatpush1.bf16.xpose.msra.mxu0 0
        %1400 = vmatprep.subr.bf16.mxu0 0
        %1401 = vmatpush1.bf16.xpose.msra.mxu0 %v1384
        %1402 = vmatprep.subr.bf16.mxu0 0
        %1403 = vmatpush2.bf16.xpose.msra.mxu0 0
        %1404 = vmatprep.subr.bf16.mxu0 0
        %1405 = vmatpush2.bf16.xpose.msra.mxu0 0
        %1406 = vmatprep.subr.bf16.mxu0 0
        %1407 = vmatpush2.bf16.xpose.msra.mxu0 0
        %1408 = vmatprep.subr.bf16.mxu0 0
        %1409 = vmatpush2.bf16.xpose.msra.mxu0 0
        %1410 = vmatprep.subr.bf16.mxu0 0
        %1411 = vmatpush2.bf16.xpose.msra.mxu0 0
        %1412 = vmatprep.subr.bf16.mxu0 0
        %1413 = vmatpush2.bf16.xpose.msra.mxu0 0
        %1414 = vmatprep.subr.bf16.mxu0 0
        %1415 = vmatpush2.bf16.xpose.msra.mxu0 0
        %1416 = vmatprep.subr.bf16.mxu0 0
        %1417 = vmatpush2.bf16.xpose.msra.mxu0 0
        %1418 = vmatprep.mubr.bf16.mxu0 0
        %1419 = vmatmul.mubr.bf16.gmra.mxu0 %v1381
        %v1420 = vpop.f32.mrf.mxu0
        %v1421 = vadd.f32 0.0, %v1420
        %v1422 = vpop.f32.mrf.mxu0
        %v1423 = vpop.f32.mrf.mxu0
        %v1424 = vpop.f32.mrf.mxu0
        %1425 = vdwg.mxu0
        %1426 = vrot.lane.b32.xlu0 %v925, 112
        %v1427 = vpop.permute.xlu0 %1426
        %1428 = vrot.lane.b32.xlu0 %v925, 80
        %v1429 = vpop.permute.xlu0 %1428
        %v1431 = vsel %vm929, %v1427, 0
        %v1434 = vsel %vm929, %v1429, 0
        %1436 = vmatprep.subr.bf16.mxu0 0
        %1437 = vmatpush1.bf16.xpose.msra.mxu0 0
        %1438 = vmatprep.subr.bf16.mxu0 0
        %1439 = vmatpush1.bf16.xpose.msra.mxu0 0
        %1440 = vmatprep.subr.bf16.mxu0 0
        %1441 = vmatpush1.bf16.xpose.msra.mxu0 0
        %1442 = vmatprep.subr.bf16.mxu0 0
        %1443 = vmatpush1.bf16.xpose.msra.mxu0 0
        %1444 = vmatprep.subr.bf16.mxu0 0
        %1445 = vmatpush1.bf16.xpose.msra.mxu0 0
        %1446 = vmatprep.subr.bf16.mxu0 0
        %1447 = vmatpush1.bf16.xpose.msra.mxu0 0
        %1448 = vmatprep.subr.bf16.mxu0 0
        %1449 = vmatpush1.bf16.xpose.msra.mxu0 0
        %1450 = vmatprep.subr.bf16.mxu0 0
        %1451 = vmatpush1.bf16.xpose.msra.mxu0 %v1434
        %1452 = vmatprep.subr.bf16.mxu0 0
        %1453 = vmatpush2.bf16.xpose.msra.mxu0 0
        %1454 = vmatprep.subr.bf16.mxu0 0
        %1455 = vmatpush2.bf16.xpose.msra.mxu0 0
        %1456 = vmatprep.subr.bf16.mxu0 0
        %1457 = vmatpush2.bf16.xpose.msra.mxu0 0
        %1458 = vmatprep.subr.bf16.mxu0 0
        %1459 = vmatpush2.bf16.xpose.msra.mxu0 0
        %1460 = vmatprep.subr.bf16.mxu0 0
        %1461 = vmatpush2.bf16.xpose.msra.mxu0 0
        %1462 = vmatprep.subr.bf16.mxu0 0
        %1463 = vmatpush2.bf16.xpose.msra.mxu0 0
        %1464 = vmatprep.subr.bf16.mxu0 0
        %1465 = vmatpush2.bf16.xpose.msra.mxu0 0
        %1466 = vmatprep.subr.bf16.mxu0 0
        %1467 = vmatpush2.bf16.xpose.msra.mxu0 0
        %1468 = vmatprep.mubr.bf16.mxu0 0
        %1469 = vmatmul.mubr.bf16.gmra.mxu0 %v1431
        %v1470 = vpop.f32.mrf.mxu0
        %v1471 = vadd.f32 0.0, %v1470
        %v1472 = vpop.f32.mrf.mxu0
        %v1473 = vpop.f32.mrf.mxu0
        %v1474 = vpop.f32.mrf.mxu0
        %1475 = vdwg.mxu0
        %v1476 = vmul.f32 %v1421, 0.35355338
        %v1477 = vmul.f32 %v1471, 0.35355338
        %v1478 = vsel %vm1028, %v1476, -1e+30
        %v1479 = vsel %vm1028, %v1477, -1e+30
        %v1480 = vsel %vm929, %v1478, -inf
        %1481 = vmax.xlane.f32.xlu0 %v1480
        %v1482 = vpop.xlane.xlu0 %1481
        %v1483 = vsel %vm929, %v1479, -inf
        %1484 = vmax.xlane.f32.xlu0 %v1483
        %v1485 = vpop.xlane.xlu0 %1484
        %v1486 = vsub.f32 %v1478, %v1482
        %v1487 = vsub.f32 %v1479, %v1485
        %v1488 = vmul.f32 %v1486, 1.442695
        %v1489 = vpow.pop %v1488
        %v1490 = vmul.f32 %v1487, 1.442695
        %v1491 = vpow.pop %v1490
        %v1492 = vsel %vm929, %v1489, 0.0
        %1493 = vadd.xlane.f32.xlu0 %v1492
        %v1494 = vpop.xlane.xlu0 %1493
        %v1495 = vsel %vm929, %v1491, 0.0
        %1496 = vadd.xlane.f32.xlu0 %v1495
        %v1497 = vpop.xlane.xlu0 %1496
        %v1498 = vrcp.pop %v1494
        %v1499 = vmul.f32 %v1489, %v1498
        %v1500 = vrcp.pop %v1497
        %v1501 = vmul.f32 %v1491, %v1500
        %v1502 = vpack.c.bf16 %v1499, %v1499
        %v1503 = vpack.c.bf16 %v1501, %v1501
        %1504 = vrot.lane.b32.xlu0 %v924, 48
        %v1505 = vpop.permute.xlu0 %1504
        %v1507 = vsel %vm929, %v1502, 0
        %v1510 = vsel %vm1060, %v1505, 0
        %1512 = vmatprep.subr.bf16.mxu0 0
        %1513 = vmatpush1.bf16.msra.mxu0 0
        %1514 = vmatprep.subr.bf16.mxu0 0
        %1515 = vmatpush1.bf16.msra.mxu0 0
        %1516 = vmatprep.subr.bf16.mxu0 0
        %1517 = vmatpush1.bf16.msra.mxu0 0
        %1518 = vmatprep.subr.bf16.mxu0 0
        %1519 = vmatpush1.bf16.msra.mxu0 0
        %1520 = vmatprep.subr.bf16.mxu0 0
        %1521 = vmatpush1.bf16.msra.mxu0 0
        %1522 = vmatprep.subr.bf16.mxu0 0
        %1523 = vmatpush1.bf16.msra.mxu0 0
        %1524 = vmatprep.subr.bf16.mxu0 0
        %1525 = vmatpush1.bf16.msra.mxu0 0
        %1526 = vmatprep.subr.bf16.mxu0 0
        %1527 = vmatpush1.bf16.msra.mxu0 %v1510
        %1528 = vmatprep.subr.bf16.mxu0 0
        %1529 = vmatpush2.bf16.msra.mxu0 0
        %1530 = vmatprep.subr.bf16.mxu0 0
        %1531 = vmatpush2.bf16.msra.mxu0 0
        %1532 = vmatprep.subr.bf16.mxu0 0
        %1533 = vmatpush2.bf16.msra.mxu0 0
        %1534 = vmatprep.subr.bf16.mxu0 0
        %1535 = vmatpush2.bf16.msra.mxu0 0
        %1536 = vmatprep.subr.bf16.mxu0 0
        %1537 = vmatpush2.bf16.msra.mxu0 0
        %1538 = vmatprep.subr.bf16.mxu0 0
        %1539 = vmatpush2.bf16.msra.mxu0 0
        %1540 = vmatprep.subr.bf16.mxu0 0
        %1541 = vmatpush2.bf16.msra.mxu0 0
        %1542 = vmatprep.subr.bf16.mxu0 0
        %1543 = vmatpush2.bf16.msra.mxu0 0
        %1544 = vmatprep.mubr.bf16.mxu0 0
        %1545 = vmatmul.mubr.bf16.gmra.mxu0 %v1507
        %v1546 = vpop.f32.mrf.mxu0
        %v1547 = vadd.f32 0.0, %v1546
        %v1548 = vpop.f32.mrf.mxu0
        %v1549 = vpop.f32.mrf.mxu0
        %v1550 = vpop.f32.mrf.mxu0
        %1551 = vdwg.mxu0
        %1552 = vrot.lane.b32.xlu0 %v925, 48
        %v1553 = vpop.permute.xlu0 %1552
        %v1555 = vsel %vm929, %v1503, 0
        %v1558 = vsel %vm1060, %v1553, 0
        %1560 = vmatprep.subr.bf16.mxu0 0
        %1561 = vmatpush1.bf16.msra.mxu0 0
        %1562 = vmatprep.subr.bf16.mxu0 0
        %1563 = vmatpush1.bf16.msra.mxu0 0
        %1564 = vmatprep.subr.bf16.mxu0 0
        %1565 = vmatpush1.bf16.msra.mxu0 0
        %1566 = vmatprep.subr.bf16.mxu0 0
        %1567 = vmatpush1.bf16.msra.mxu0 0
        %1568 = vmatprep.subr.bf16.mxu0 0
        %1569 = vmatpush1.bf16.msra.mxu0 0
        %1570 = vmatprep.subr.bf16.mxu0 0
        %1571 = vmatpush1.bf16.msra.mxu0 0
        %1572 = vmatprep.subr.bf16.mxu0 0
        %1573 = vmatpush1.bf16.msra.mxu0 0
        %1574 = vmatprep.subr.bf16.mxu0 0
        %1575 = vmatpush1.bf16.msra.mxu0 %v1558
        %1576 = vmatprep.subr.bf16.mxu0 0
        %1577 = vmatpush2.bf16.msra.mxu0 0
        %1578 = vmatprep.subr.bf16.mxu0 0
        %1579 = vmatpush2.bf16.msra.mxu0 0
        %1580 = vmatprep.subr.bf16.mxu0 0
        %1581 = vmatpush2.bf16.msra.mxu0 0
        %1582 = vmatprep.subr.bf16.mxu0 0
        %1583 = vmatpush2.bf16.msra.mxu0 0
        %1584 = vmatprep.subr.bf16.mxu0 0
        %1585 = vmatpush2.bf16.msra.mxu0 0
        %1586 = vmatprep.subr.bf16.mxu0 0
        %1587 = vmatpush2.bf16.msra.mxu0 0
        %1588 = vmatprep.subr.bf16.mxu0 0
        %1589 = vmatpush2.bf16.msra.mxu0 0
        %1590 = vmatprep.subr.bf16.mxu0 0
        %1591 = vmatpush2.bf16.msra.mxu0 0
        %1592 = vmatprep.mubr.bf16.mxu0 0
        %1593 = vmatmul.mubr.bf16.gmra.mxu0 %v1555
        %v1594 = vpop.f32.mrf.mxu0
        %v1595 = vadd.f32 0.0, %v1594
        %v1596 = vpop.f32.mrf.mxu0
        %v1597 = vpop.f32.mrf.mxu0
        %v1598 = vpop.f32.mrf.mxu0
        %1599 = vdwg.mxu0
        %1600 = vrot.lane.b32.xlu0 %v924, 104
        %v1601 = vpop.permute.xlu0 %1600
        %1602 = vrot.lane.b32.xlu0 %v924, 72
        %v1603 = vpop.permute.xlu0 %1602
        %v1605 = vsel %vm929, %v1601, 0
        %v1608 = vsel %vm929, %v1603, 0
        %1610 = vmatprep.subr.bf16.mxu0 0
        %1611 = vmatpush1.bf16.xpose.msra.mxu0 0
        %1612 = vmatprep.subr.bf16.mxu0 0
        %1613 = vmatpush1.bf16.xpose.msra.mxu0 0
        %1614 = vmatprep.subr.bf16.mxu0 0
        %1615 = vmatpush1.bf16.xpose.msra.mxu0 0
        %1616 = vmatprep.subr.bf16.mxu0 0
        %1617 = vmatpush1.bf16.xpose.msra.mxu0 0
        %1618 = vmatprep.subr.bf16.mxu0 0
        %1619 = vmatpush1.bf16.xpose.msra.mxu0 0
        %1620 = vmatprep.subr.bf16.mxu0 0
        %1621 = vmatpush1.bf16.xpose.msra.mxu0 0
        %1622 = vmatprep.subr.bf16.mxu0 0
        %1623 = vmatpush1.bf16.xpose.msra.mxu0 0
        %1624 = vmatprep.subr.bf16.mxu0 0
        %1625 = vmatpush1.bf16.xpose.msra.mxu0 %v1608
        %1626 = vmatprep.subr.bf16.mxu0 0
        %1627 = vmatpush2.bf16.xpose.msra.mxu0 0
        %1628 = vmatprep.subr.bf16.mxu0 0
        %1629 = vmatpush2.bf16.xpose.msra.mxu0 0
        %1630 = vmatprep.subr.bf16.mxu0 0
        %1631 = vmatpush2.bf16.xpose.msra.mxu0 0
        %1632 = vmatprep.subr.bf16.mxu0 0
        %1633 = vmatpush2.bf16.xpose.msra.mxu0 0
        %1634 = vmatprep.subr.bf16.mxu0 0
        %1635 = vmatpush2.bf16.xpose.msra.mxu0 0
        %1636 = vmatprep.subr.bf16.mxu0 0
        %1637 = vmatpush2.bf16.xpose.msra.mxu0 0
        %1638 = vmatprep.subr.bf16.mxu0 0
        %1639 = vmatpush2.bf16.xpose.msra.mxu0 0
        %1640 = vmatprep.subr.bf16.mxu0 0
        %1641 = vmatpush2.bf16.xpose.msra.mxu0 0
        %1642 = vmatprep.mubr.bf16.mxu0 0
        %1643 = vmatmul.mubr.bf16.gmra.mxu0 %v1605
        %v1644 = vpop.f32.mrf.mxu0
        %v1645 = vadd.f32 0.0, %v1644
        %v1646 = vpop.f32.mrf.mxu0
        %v1647 = vpop.f32.mrf.mxu0
        %v1648 = vpop.f32.mrf.mxu0
        %1649 = vdwg.mxu0
        %1650 = vrot.lane.b32.xlu0 %v925, 104
        %v1651 = vpop.permute.xlu0 %1650
        %1652 = vrot.lane.b32.xlu0 %v925, 72
        %v1653 = vpop.permute.xlu0 %1652
        %v1655 = vsel %vm929, %v1651, 0
        %v1658 = vsel %vm929, %v1653, 0
        %1660 = vmatprep.subr.bf16.mxu0 0
        %1661 = vmatpush1.bf16.xpose.msra.mxu0 0
        %1662 = vmatprep.subr.bf16.mxu0 0
        %1663 = vmatpush1.bf16.xpose.msra.mxu0 0
        %1664 = vmatprep.subr.bf16.mxu0 0
        %1665 = vmatpush1.bf16.xpose.msra.mxu0 0
        %1666 = vmatprep.subr.bf16.mxu0 0
        %1667 = vmatpush1.bf16.xpose.msra.mxu0 0
        %1668 = vmatprep.subr.bf16.mxu0 0
        %1669 = vmatpush1.bf16.xpose.msra.mxu0 0
        %1670 = vmatprep.subr.bf16.mxu0 0
        %1671 = vmatpush1.bf16.xpose.msra.mxu0 0
        %1672 = vmatprep.subr.bf16.mxu0 0
        %1673 = vmatpush1.bf16.xpose.msra.mxu0 0
        %1674 = vmatprep.subr.bf16.mxu0 0
        %1675 = vmatpush1.bf16.xpose.msra.mxu0 %v1658
        %1676 = vmatprep.subr.bf16.mxu0 0
        %1677 = vmatpush2.bf16.xpose.msra.mxu0 0
        %1678 = vmatprep.subr.bf16.mxu0 0
        %1679 = vmatpush2.bf16.xpose.msra.mxu0 0
        %1680 = vmatprep.subr.bf16.mxu0 0
        %1681 = vmatpush2.bf16.xpose.msra.mxu0 0
        %1682 = vmatprep.subr.bf16.mxu0 0
        %1683 = vmatpush2.bf16.xpose.msra.mxu0 0
        %1684 = vmatprep.subr.bf16.mxu0 0
        %1685 = vmatpush2.bf16.xpose.msra.mxu0 0
        %1686 = vmatprep.subr.bf16.mxu0 0
        %1687 = vmatpush2.bf16.xpose.msra.mxu0 0
        %1688 = vmatprep.subr.bf16.mxu0 0
        %1689 = vmatpush2.bf16.xpose.msra.mxu0 0
        %1690 = vmatprep.subr.bf16.mxu0 0
        %1691 = vmatpush2.bf16.xpose.msra.mxu0 0
        %1692 = vmatprep.mubr.bf16.mxu0 0
        %1693 = vmatmul.mubr.bf16.gmra.mxu0 %v1655
        %v1694 = vpop.f32.mrf.mxu0
        %v1695 = vadd.f32 0.0, %v1694
        %v1696 = vpop.f32.mrf.mxu0
        %v1697 = vpop.f32.mrf.mxu0
        %v1698 = vpop.f32.mrf.mxu0
        %1699 = vdwg.mxu0
        %v1700 = vmul.f32 %v1645, 0.35355338
        %v1701 = vmul.f32 %v1695, 0.35355338
        %v1702 = vsel %vm1028, %v1700, -1e+30
        %v1703 = vsel %vm1028, %v1701, -1e+30
        %v1704 = vsel %vm929, %v1702, -inf
        %1705 = vmax.xlane.f32.xlu0 %v1704
        %v1706 = vpop.xlane.xlu0 %1705
        %v1707 = vsel %vm929, %v1703, -inf
        %1708 = vmax.xlane.f32.xlu0 %v1707
        %v1709 = vpop.xlane.xlu0 %1708
        %v1710 = vsub.f32 %v1702, %v1706
        %v1711 = vsub.f32 %v1703, %v1709
        %v1712 = vmul.f32 %v1710, 1.442695
        %v1713 = vpow.pop %v1712
        %v1714 = vmul.f32 %v1711, 1.442695
        %v1715 = vpow.pop %v1714
        %v1716 = vsel %vm929, %v1713, 0.0
        %1717 = vadd.xlane.f32.xlu0 %v1716
        %v1718 = vpop.xlane.xlu0 %1717
        %v1719 = vsel %vm929, %v1715, 0.0
        %1720 = vadd.xlane.f32.xlu0 %v1719
        %v1721 = vpop.xlane.xlu0 %1720
        %v1722 = vrcp.pop %v1718
        %v1723 = vmul.f32 %v1713, %v1722
        %v1724 = vrcp.pop %v1721
        %v1725 = vmul.f32 %v1715, %v1724
        %v1726 = vpack.c.bf16 %v1723, %v1723
        %v1727 = vpack.c.bf16 %v1725, %v1725
        %1728 = vrot.lane.b32.xlu0 %v924, 40
        %v1729 = vpop.permute.xlu0 %1728
        %v1731 = vsel %vm929, %v1726, 0
        %v1734 = vsel %vm1060, %v1729, 0
        %1736 = vmatprep.subr.bf16.mxu0 0
        %1737 = vmatpush1.bf16.msra.mxu0 0
        %1738 = vmatprep.subr.bf16.mxu0 0
        %1739 = vmatpush1.bf16.msra.mxu0 0
        %1740 = vmatprep.subr.bf16.mxu0 0
        %1741 = vmatpush1.bf16.msra.mxu0 0
        %1742 = vmatprep.subr.bf16.mxu0 0
        %1743 = vmatpush1.bf16.msra.mxu0 0
        %1744 = vmatprep.subr.bf16.mxu0 0
        %1745 = vmatpush1.bf16.msra.mxu0 0
        %1746 = vmatprep.subr.bf16.mxu0 0
        %1747 = vmatpush1.bf16.msra.mxu0 0
        %1748 = vmatprep.subr.bf16.mxu0 0
        %1749 = vmatpush1.bf16.msra.mxu0 0
        %1750 = vmatprep.subr.bf16.mxu0 0
        %1751 = vmatpush1.bf16.msra.mxu0 %v1734
        %1752 = vmatprep.subr.bf16.mxu0 0
        %1753 = vmatpush2.bf16.msra.mxu0 0
        %1754 = vmatprep.subr.bf16.mxu0 0
        %1755 = vmatpush2.bf16.msra.mxu0 0
        %1756 = vmatprep.subr.bf16.mxu0 0
        %1757 = vmatpush2.bf16.msra.mxu0 0
        %1758 = vmatprep.subr.bf16.mxu0 0
        %1759 = vmatpush2.bf16.msra.mxu0 0
        %1760 = vmatprep.subr.bf16.mxu0 0
        %1761 = vmatpush2.bf16.msra.mxu0 0
        %1762 = vmatprep.subr.bf16.mxu0 0
        %1763 = vmatpush2.bf16.msra.mxu0 0
        %1764 = vmatprep.subr.bf16.mxu0 0
        %1765 = vmatpush2.bf16.msra.mxu0 0
        %1766 = vmatprep.subr.bf16.mxu0 0
        %1767 = vmatpush2.bf16.msra.mxu0 0
        %1768 = vmatprep.mubr.bf16.mxu0 0
        %1769 = vmatmul.mubr.bf16.gmra.mxu0 %v1731
        %v1770 = vpop.f32.mrf.mxu0
        %v1771 = vadd.f32 0.0, %v1770
        %v1772 = vpop.f32.mrf.mxu0
        %v1773 = vpop.f32.mrf.mxu0
        %v1774 = vpop.f32.mrf.mxu0
        %1775 = vdwg.mxu0
        %1776 = vrot.lane.b32.xlu0 %v925, 40
        %v1777 = vpop.permute.xlu0 %1776
        %v1779 = vsel %vm929, %v1727, 0
        %v1782 = vsel %vm1060, %v1777, 0
        %1784 = vmatprep.subr.bf16.mxu0 0
        %1785 = vmatpush1.bf16.msra.mxu0 0
        %1786 = vmatprep.subr.bf16.mxu0 0
        %1787 = vmatpush1.bf16.msra.mxu0 0
        %1788 = vmatprep.subr.bf16.mxu0 0
        %1789 = vmatpush1.bf16.msra.mxu0 0
        %1790 = vmatprep.subr.bf16.mxu0 0
        %1791 = vmatpush1.bf16.msra.mxu0 0
        %1792 = vmatprep.subr.bf16.mxu0 0
        %1793 = vmatpush1.bf16.msra.mxu0 0
        %1794 = vmatprep.subr.bf16.mxu0 0
        %1795 = vmatpush1.bf16.msra.mxu0 0
        %1796 = vmatprep.subr.bf16.mxu0 0
        %1797 = vmatpush1.bf16.msra.mxu0 0
        %1798 = vmatprep.subr.bf16.mxu0 0
        %1799 = vmatpush1.bf16.msra.mxu0 %v1782
        %1800 = vmatprep.subr.bf16.mxu0 0
        %1801 = vmatpush2.bf16.msra.mxu0 0
        %1802 = vmatprep.subr.bf16.mxu0 0
        %1803 = vmatpush2.bf16.msra.mxu0 0
        %1804 = vmatprep.subr.bf16.mxu0 0
        %1805 = vmatpush2.bf16.msra.mxu0 0
        %1806 = vmatprep.subr.bf16.mxu0 0
        %1807 = vmatpush2.bf16.msra.mxu0 0
        %1808 = vmatprep.subr.bf16.mxu0 0
        %1809 = vmatpush2.bf16.msra.mxu0 0
        %1810 = vmatprep.subr.bf16.mxu0 0
        %1811 = vmatpush2.bf16.msra.mxu0 0
        %1812 = vmatprep.subr.bf16.mxu0 0
        %1813 = vmatpush2.bf16.msra.mxu0 0
        %1814 = vmatprep.subr.bf16.mxu0 0
        %1815 = vmatpush2.bf16.msra.mxu0 0
        %1816 = vmatprep.mubr.bf16.mxu0 0
        %1817 = vmatmul.mubr.bf16.gmra.mxu0 %v1779
        %v1818 = vpop.f32.mrf.mxu0
        %v1819 = vadd.f32 0.0, %v1818
        %v1820 = vpop.f32.mrf.mxu0
        %v1821 = vpop.f32.mrf.mxu0
        %v1822 = vpop.f32.mrf.mxu0
        %1823 = vdwg.mxu0
        %1826 = vrot.lane.b32.xlu0 %v1323, 8
        %v1827 = vpop.permute.xlu0 %1826
        %1828 = vrot.lane.b32.xlu0 %v1371, 8
        %v1829 = vpop.permute.xlu0 %1828
        %1834 = vrot.lane.b32.xlu0 %v1547, 16
        %v1835 = vpop.permute.xlu0 %1834
        %1836 = vrot.lane.b32.xlu0 %v1595, 16
        %v1837 = vpop.permute.xlu0 %1836
        %1842 = vrot.lane.b32.xlu0 %v1771, 24
        %v1843 = vpop.permute.xlu0 %1842
        %1844 = vrot.lane.b32.xlu0 %v1819, 24
        %v1845 = vpop.permute.xlu0 %1844
        %v1848 = vsel %vm929, %v1099, %v1827
        %v1849 = vsel %vm929, %v1147, %v1829
        %vm1850 = vcmask 130048
        %v1851 = vsel %vm1850, %v1848, %v1835
        %v1852 = vsel %vm1850, %v1849, %v1837
        %vm1853 = vcmask 195584
        %v1854 = vsel %vm1853, %v1851, %v1843
        %v1855 = vsel %vm1853, %v1852, %v1845
        %v1856 = vld [vmem:[%s764] sm:$0xf]
        %v1857 = vld [vmem:[%s764 + $0x4] sm:$0xf]
        %v1858 = vld [vmem:[%s764 + $0x8] sm:$0xf]
        %v1859 = vld [vmem:[%s764 + $0xc] sm:$0xf]
        %v1860 = vpack.c.bf16 %v1855, %v1854
        %v1865 = vunpack.c.l.b16 %v1856
        %v1866 = vunpack.c.l.b16 %v1857
        %v1867 = vunpack.c.l.b16 %v1858
        %v1868 = vunpack.c.l.b16 %v1859
        %v1869 = vpack.c.b16 %v1866, %v1865
        %v1870 = vpack.c.b16 %v1868, %v1867
        %v1874 = vsel %vm807, %v1860, 0
        %1876 = vmatprep.subr.bf16.mxu0 0
        %1877 = vmatpush1.bf16.msra.mxu0 0
        %1878 = vmatprep.subr.bf16.mxu0 0
        %1879 = vmatpush1.bf16.msra.mxu0 0
        %1880 = vmatprep.subr.bf16.mxu0 0
        %1881 = vmatpush1.bf16.msra.mxu0 0
        %1882 = vmatprep.subr.bf16.mxu0 0
        %1883 = vmatpush1.bf16.msra.mxu0 0
        %1884 = vmatprep.subr.bf16.mxu0 0
        %1885 = vmatpush1.bf16.msra.mxu0 0
        %1886 = vmatprep.subr.bf16.mxu0 0
        %1887 = vmatpush1.bf16.msra.mxu0 0
        %1888 = vmatprep.subr.bf16.mxu0 0
        %1889 = vmatpush1.bf16.msra.mxu0 %v1870
        %1890 = vmatprep.subr.bf16.mxu0 0
        %1891 = vmatpush1.bf16.msra.mxu0 %v1869
        %1892 = vmatprep.subr.bf16.mxu0 0
        %1893 = vmatpush2.bf16.msra.mxu0 0
        %1894 = vmatprep.subr.bf16.mxu0 0
        %1895 = vmatpush2.bf16.msra.mxu0 0
        %1896 = vmatprep.subr.bf16.mxu0 0
        %1897 = vmatpush2.bf16.msra.mxu0 0
        %1898 = vmatprep.subr.bf16.mxu0 0
        %1899 = vmatpush2.bf16.msra.mxu0 0
        %1900 = vmatprep.subr.bf16.mxu0 0
        %1901 = vmatpush2.bf16.msra.mxu0 0
        %1902 = vmatprep.subr.bf16.mxu0 0
        %1903 = vmatpush2.bf16.msra.mxu0 0
        %1904 = vmatprep.subr.bf16.mxu0 0
        %1905 = vmatpush2.bf16.msra.mxu0 0
        %1906 = vmatprep.subr.bf16.mxu0 0
        %1907 = vmatpush2.bf16.msra.mxu0 0
        %1908 = vmatprep.mubr.bf16.mxu0 0
        %1909 = vmatmul.mubr.bf16.gmra.mxu0 %v1874
        %v1910 = vpop.f32.mrf.mxu0
        %v1911 = vadd.f32 0.0, %v1910
        %v1912 = vpop.f32.mrf.mxu0
        %v1913 = vpop.f32.mrf.mxu0
        %v1914 = vadd.f32 0.0, %v1913
        %v1915 = vpop.f32.mrf.mxu0
        %1916 = vdwg.mxu0
        %v1917 = vadd.f32 %v803, %v1911
        %v1918 = vadd.f32 %v804, %v1914
        %v1919 = vld [vmem:[%s767] sm:$0x1]
        %v1921 = vlaneseq
        %v1922 = vshrl.u32 %v1921, 7
        %v1923 = vsub.s32 0, %v1922
        %v1924 = vrot.slane %v1919, %v1923
        %v1926 = vadd.f32 %v1917, %v1924
        %v1927 = vadd.f32 %v1918, %v1924
        %v1928 = vld [vmem:[%s770] sm:$0x1]
        %v1929 = vld [vmem:[%s773] sm:$0x1]
        %v1930 = vsel %vm807, %v1926, 0.0
        %1931 = vadd.xlane.f32.xlu0 %v1930
        %v1932 = vpop.xlane.xlu0 %1931
        %v1933 = vsel %vm807, %v1927, 0.0
        %1934 = vadd.xlane.f32.xlu0 %v1933
        %v1935 = vpop.xlane.xlu0 %1934
        %v1936 = vmul.f32 %v1932, %v814
        %v1937 = vmul.f32 %v1935, %v814
        %v1938 = vsub.f32 %v1926, %v1936
        %v1939 = vsub.f32 %v1927, %v1937
        %v1940 = vmul.f32 %v1938, %v1938
        %v1941 = vmul.f32 %v1939, %v1939
        %v1942 = vsel %vm807, %v1940, 0.0
        %1943 = vadd.xlane.f32.xlu0 %v1942
        %v1944 = vpop.xlane.xlu0 %1943
        %v1945 = vsel %vm807, %v1941, 0.0
        %1946 = vadd.xlane.f32.xlu0 %v1945
        %v1947 = vpop.xlane.xlu0 %1946
        %v1948 = vmul.f32 %v1944, %v814
        %v1949 = vmul.f32 %v1947, %v814
        %v1950 = vadd.f32 %v1948, 1e-05
        %v1951 = vadd.f32 %v1949, 1e-05
        %v1952 = vrsqrt.pop %v1950
        %v1953 = vrsqrt.pop %v1951
        %v1954 = vmul.f32 %v1938, %v1952
        %v1955 = vmul.f32 %v1939, %v1953
        %v1957 = vlaneseq
        %v1958 = vshrl.u32 %v1957, 7
        %v1959 = vsub.s32 0, %v1958
        %v1960 = vrot.slane %v1928, %v1959
        %v1962 = vmul.f32 %v1954, %v1960
        %v1963 = vmul.f32 %v1955, %v1960
        %v1965 = vlaneseq
        %v1966 = vshrl.u32 %v1965, 7
        %v1967 = vsub.s32 0, %v1966
        %v1968 = vrot.slane %v1929, %v1967
        %v1970 = vadd.f32 %v1962, %v1968
        %v1971 = vadd.f32 %v1963, %v1968
        %v1972 = vld [vmem:[%s778] sm:$0xf]
        %v1973 = vld [vmem:[%s778 + $0x4] sm:$0xf]
        %v1974 = vld [vmem:[%s778 + $0x8] sm:$0xf]
        %v1975 = vld [vmem:[%s778 + $0xc] sm:$0xf]
        %v1976 = vpack.c.bf16 %v1971, %v1970
        %v1977 = vld [vmem:[%s781] sm:$0x1]
        %v1979 = vlaneseq
        %v1980 = vshrl.u32 %v1979, 7
        %v1981 = vsub.s32 0, %v1980
        %v1982 = vrot.slane %v1977, %v1981
        %v1988 = vunpack.c.l.b16 %v1972
        %v1989 = vunpack.c.l.b16 %v1973
        %v1990 = vunpack.c.l.b16 %v1974
        %v1991 = vunpack.c.l.b16 %v1975
        %v1992 = vpack.c.b16 %v1989, %v1988
        %v1993 = vpack.c.b16 %v1991, %v1990
        %v1997 = vsel %vm807, %v1976, 0
        %1999 = vmatprep.subr.bf16.mxu0 0
        %2000 = vmatpush1.bf16.msra.mxu0 0
        %2001 = vmatprep.subr.bf16.mxu0 0
        %2002 = vmatpush1.bf16.msra.mxu0 0
        %2003 = vmatprep.subr.bf16.mxu0 0
        %2004 = vmatpush1.bf16.msra.mxu0 0
        %2005 = vmatprep.subr.bf16.mxu0 0
        %2006 = vmatpush1.bf16.msra.mxu0 0
        %2007 = vmatprep.subr.bf16.mxu0 0
        %2008 = vmatpush1.bf16.msra.mxu0 0
        %2009 = vmatprep.subr.bf16.mxu0 0
        %2010 = vmatpush1.bf16.msra.mxu0 0
        %2011 = vmatprep.subr.bf16.mxu0 0
        %2012 = vmatpush1.bf16.msra.mxu0 %v1993
        %2013 = vmatprep.subr.bf16.mxu0 0
        %2014 = vmatpush1.bf16.msra.mxu0 %v1992
        %2015 = vmatprep.subr.bf16.mxu0 0
        %2016 = vmatpush2.bf16.msra.mxu0 0
        %2017 = vmatprep.subr.bf16.mxu0 0
        %2018 = vmatpush2.bf16.msra.mxu0 0
        %2019 = vmatprep.subr.bf16.mxu0 0
        %2020 = vmatpush2.bf16.msra.mxu0 0
        %2021 = vmatprep.subr.bf16.mxu0 0
        %2022 = vmatpush2.bf16.msra.mxu0 0
        %2023 = vmatprep.subr.bf16.mxu0 0
        %2024 = vmatpush2.bf16.msra.mxu0 0
        %2025 = vmatprep.subr.bf16.mxu0 0
        %2026 = vmatpush2.bf16.msra.mxu0 0
        %2027 = vmatprep.subr.bf16.mxu0 0
        %2028 = vmatpush2.bf16.msra.mxu0 0
        %2029 = vmatprep.subr.bf16.mxu0 0
        %2030 = vmatpush2.bf16.msra.mxu0 0
        %2031 = vmatprep.mubr.bf16.mxu0 0
        %2032 = vmatmul.mubr.bf16.gmra.mxu0 %v1997
        %v2033 = vpop.f32.mrf.mxu0
        %v2034 = vadd.f32 %v1982, %v2033
        %v2035 = vpop.f32.mrf.mxu0
        %v2036 = vpop.f32.mrf.mxu0
        %v2037 = vadd.f32 %v1982, %v2036
        %v2038 = vpop.f32.mrf.mxu0
        %2039 = vdwg.mxu0
        %v2040 = vmul.f32 %v2034, -1.702
        %v2041 = vmul.f32 %v2037, -1.702
        %v2042 = vmul.f32 %v2040, 1.442695
        %v2043 = vpow.pop %v2042
        %v2044 = vmul.f32 %v2041, 1.442695
        %v2045 = vpow.pop %v2044
        %v2046 = vadd.f32 %v2043, 1.0
        %v2047 = vadd.f32 %v2045, 1.0
        %v2048 = vrcp.pop %v2046
        %v2049 = vmul.f32 1.0, %v2048
        %v2050 = vrcp.pop %v2047
        %v2051 = vmul.f32 1.0, %v2050
        %v2052 = vmul.f32 %v2034, %v2049
        %v2053 = vmul.f32 %v2037, %v2051
        %v2054 = vld [vmem:[%s786] sm:$0xf]
        %v2055 = vld [vmem:[%s786 + $0x4] sm:$0xf]
        %v2056 = vld [vmem:[%s786 + $0x8] sm:$0xf]
        %v2057 = vld [vmem:[%s786 + $0xc] sm:$0xf]
        %v2058 = vld [vmem:[%s786 + $0x10] sm:$0xf]
        %v2059 = vld [vmem:[%s786 + $0x14] sm:$0xf]
        %v2060 = vld [vmem:[%s786 + $0x18] sm:$0xf]
        %v2061 = vld [vmem:[%s786 + $0x1c] sm:$0xf]
        %v2062 = vld [vmem:[%s786 + $0x20] sm:$0xf]
        %v2063 = vld [vmem:[%s786 + $0x24] sm:$0xf]
        %v2064 = vld [vmem:[%s786 + $0x28] sm:$0xf]
        %v2065 = vld [vmem:[%s786 + $0x2c] sm:$0xf]
        %v2066 = vld [vmem:[%s786 + $0x30] sm:$0xf]
        %v2067 = vld [vmem:[%s786 + $0x34] sm:$0xf]
        %v2068 = vld [vmem:[%s786 + $0x38] sm:$0xf]
        %v2069 = vld [vmem:[%s786 + $0x3c] sm:$0xf]
        %v2070 = vpack.c.bf16 %v2053, %v2052
        %v2087 = vunpack.c.l.b16 %v2054
        %v2088 = vunpack.c.l.b16 %v2055
        %v2089 = vunpack.c.l.b16 %v2056
        %v2090 = vunpack.c.l.b16 %v2057
        %v2091 = vunpack.c.l.b16 %v2058
        %v2092 = vunpack.c.l.b16 %v2059
        %v2093 = vunpack.c.l.b16 %v2060
        %v2094 = vunpack.c.l.b16 %v2061
        %v2095 = vunpack.c.l.b16 %v2062
        %v2096 = vunpack.c.l.b16 %v2063
        %v2097 = vunpack.c.l.b16 %v2064
        %v2098 = vunpack.c.l.b16 %v2065
        %v2099 = vunpack.c.l.b16 %v2066
        %v2100 = vunpack.c.l.b16 %v2067
        %v2101 = vunpack.c.l.b16 %v2068
        %v2102 = vunpack.c.l.b16 %v2069
        %v2103 = vpack.c.b16 %v2088, %v2087
        %v2104 = vpack.c.b16 %v2090, %v2089
        %v2105 = vpack.c.b16 %v2092, %v2091
        %v2106 = vpack.c.b16 %v2094, %v2093
        %v2107 = vpack.c.b16 %v2096, %v2095
        %v2108 = vpack.c.b16 %v2098, %v2097
        %v2109 = vpack.c.b16 %v2100, %v2099
        %v2110 = vpack.c.b16 %v2102, %v2101
        %2119 = vmatprep.subr.bf16.mxu0 0
        %2120 = vmatpush1.bf16.msra.mxu0 %v2110
        %2121 = vmatprep.subr.bf16.mxu0 0
        %2122 = vmatpush1.bf16.msra.mxu0 %v2109
        %2123 = vmatprep.subr.bf16.mxu0 0
        %2124 = vmatpush1.bf16.msra.mxu0 %v2108
        %2125 = vmatprep.subr.bf16.mxu0 0
        %2126 = vmatpush1.bf16.msra.mxu0 %v2107
        %2127 = vmatprep.subr.bf16.mxu0 0
        %2128 = vmatpush1.bf16.msra.mxu0 %v2106
        %2129 = vmatprep.subr.bf16.mxu0 0
        %2130 = vmatpush1.bf16.msra.mxu0 %v2105
        %2131 = vmatprep.subr.bf16.mxu0 0
        %2132 = vmatpush1.bf16.msra.mxu0 %v2104
        %2133 = vmatprep.subr.bf16.mxu0 0
        %2134 = vmatpush1.bf16.msra.mxu0 %v2103
        %2135 = vmatprep.subr.bf16.mxu0 0
        %2136 = vmatpush2.bf16.msra.mxu0 0
        %2137 = vmatprep.subr.bf16.mxu0 0
        %2138 = vmatpush2.bf16.msra.mxu0 0
        %2139 = vmatprep.subr.bf16.mxu0 0
        %2140 = vmatpush2.bf16.msra.mxu0 0
        %2141 = vmatprep.subr.bf16.mxu0 0
        %2142 = vmatpush2.bf16.msra.mxu0 0
        %2143 = vmatprep.subr.bf16.mxu0 0
        %2144 = vmatpush2.bf16.msra.mxu0 0
        %2145 = vmatprep.subr.bf16.mxu0 0
        %2146 = vmatpush2.bf16.msra.mxu0 0
        %2147 = vmatprep.subr.bf16.mxu0 0
        %2148 = vmatpush2.bf16.msra.mxu0 0
        %2149 = vmatprep.subr.bf16.mxu0 0
        %2150 = vmatpush2.bf16.msra.mxu0 0
        %2151 = vmatprep.mubr.bf16.mxu0 0
        %2152 = vmatmul.mubr.bf16.gmra.mxu0 %v2070
        %v2153 = vpop.f32.mrf.mxu0
        %v2154 = vadd.f32 0.0, %v2153
        %v2155 = vpop.f32.mrf.mxu0
        %v2156 = vpop.f32.mrf.mxu0
        %v2157 = vadd.f32 0.0, %v2156
        %v2158 = vpop.f32.mrf.mxu0
        %2159 = vdwg.mxu0
        %v2160 = vadd.f32 %v1926, %v2154
        %v2161 = vadd.f32 %v1927, %v2157
        %v2162 = vld [vmem:[%s789] sm:$0x1]
        %v2164 = vlaneseq
        %v2165 = vshrl.u32 %v2164, 7
        %v2166 = vsub.s32 0, %v2165
        %v2167 = vrot.slane %v2162, %v2166
        %v2169 = vadd.f32 %v2160, %v2167
        %v2170 = vadd.f32 %v2161, %v2167
        %2171 = vst.msk [vmem:[#allocation2] sm:$0xff] %vm807, %v2169
        %2172 = vst.msk [vmem:[#allocation2 + $0x8] sm:$0xff] %vm807, %v2170
        %p2173 = scmp.eq.s32.totalorder %s35, 1
        // Predicated region
        $region97: #{tpu_custom_call.1} parent=91 // pred_check
          %p2174 = pneg %p2173
        $region98: #{tpu_custom_call.1} parent=91 // pred_check_branch
          %2176 = sbr.rel (%p2174) target = $region100
        $region99: #{tpu_custom_call.1} parent=91 // pred_region
          %v2177 = vld [vmem:[%s745] sm:$0x3]
          %v2178 = vlaneseq
          %v2179 = vshrl.u32 %v2178, 7
          %v2180 = vsub.s32 0, %v2179
          %v2181 = vrot.slane %v2177, %v2180
          %2183 = vbcast.lane.b32.xlu0 %v2181, 256
          %v2184 = vpop.permute.xlu0 %2183
          %v2185 = vlaneseq
          %v2186 = vshrl.u32 %v2185, 7
          %v2187 = vsub.s32 1, %v2186
          %v2188 = vrot.slane %v2177, %v2187
          %2190 = vbcast.lane.b32.xlu0 %v2188, 256
          %v2191 = vpop.permute.xlu0 %2190
          %v2192 = vmul.f32 %v2169, %v2184
          %v2193 = vmul.f32 %v2170, %v2191
          %v2194 = vsel %vm807, %v2192, 0.0
          %v2195 = vrot.slane %v2194, 4
          %v2196 = vadd.f32 %v2194, %v2195
          %v2197 = vrot.slane %v2196, 2
          %v2198 = vadd.f32 %v2196, %v2197
          %v2199 = vrot.slane %v2198, 1
          %v2200 = vadd.f32 %v2198, %v2199
          %v2201 = vsel %vm807, %v2193, 0.0
          %v2202 = vrot.slane %v2201, 4
          %v2203 = vadd.f32 %v2201, %v2202
          %v2204 = vrot.slane %v2203, 2
          %v2205 = vadd.f32 %v2203, %v2204
          %v2206 = vrot.slane %v2205, 1
          %v2207 = vadd.f32 %v2205, %v2206
          %v2208 = vld [vmem:[%s15] sm:$0x1]
          %v2209 = vld [vmem:[%s16] sm:$0x1]
          %vm2212 = vcmask 1041409
          %v2213 = vsel %vm2212, %v2207, %v2200
          %vm2215 = vcmask 254976
          %v2216 = vsel %vm2215, %v2213, 0.0
          %2217 = vadd.xlane.f32.xlu0 %v2216
          %v2218 = vpop.xlane.xlu0 %2217
          %v2219 = vmul.f32 %v2218, %v814
          %v2221 = vrot.slane %v2219, 1
          %v2224 = vsub.f32 %v2200, %v2219
          %v2225 = vsub.f32 %v2207, %v2221
          %v2226 = vmul.f32 %v2224, %v2224
          %v2227 = vmul.f32 %v2225, %v2225
          %v2230 = vrot.slane %v2227, 7
          %v2231 = vsel %vm2212, %v2230, %v2226
          %v2233 = vsel %vm2215, %v2231, 0.0
          %2234 = vadd.xlane.f32.xlu0 %v2233
          %v2235 = vpop.xlane.xlu0 %2234
          %v2236 = vmul.f32 %v2235, %v814
          %v2237 = vadd.f32 %v2236, 1e-05
          %v2238 = vrsqrt.pop %v2237
          %v2240 = vrot.slane %v2238, 1
          %v2243 = vmul.f32 %v2224, %v2238
          %v2244 = vmul.f32 %v2225, %v2240
          %v2246 = vlaneseq
          %v2247 = vshrl.u32 %v2246, 7
          %v2248 = vsub.s32 0, %v2247
          %v2249 = vrot.slane %v2208, %v2248
          %v2251 = vmul.f32 %v2243, %v2249
          %v2252 = vmul.f32 %v2244, %v2249
          %v2254 = vlaneseq
          %v2255 = vshrl.u32 %v2254, 7
          %v2256 = vsub.s32 0, %v2255
          %v2257 = vrot.slane %v2209, %v2256
          %v2259 = vadd.f32 %v2251, %v2257
          %v2260 = vadd.f32 %v2252, %v2257
          %v2261 = vld [vmem:[%s17] sm:$0xf]
          %v2262 = vld [vmem:[%s17 + $0x4] sm:$0xf]
          %v2263 = vld [vmem:[%s17 + $0x8] sm:$0xf]
          %v2264 = vld [vmem:[%s17 + $0xc] sm:$0xf]
          %v2265 = vpack.c.bf16 %v2259, %v2259
          %v2266 = vpack.c.bf16 %v2260, %v2260
          %v2269 = vunpack.c.l.b16 %v2265
          %v2270 = vunpack.c.l.b16 %v2266
          %v2271 = vrot.slane %v2270, 7
          %v2272 = vsel %vm2212, %v2271, %v2269
          %v2273 = vpack.c.b16 %v2272, %v2272
          %v2278 = vunpack.c.l.b16 %v2261
          %v2279 = vunpack.c.l.b16 %v2262
          %v2280 = vunpack.c.l.b16 %v2263
          %v2281 = vunpack.c.l.b16 %v2264
          %v2282 = vpack.c.b16 %v2279, %v2278
          %v2283 = vpack.c.b16 %v2281, %v2280
          %v2287 = vsel %vm807, %v2273, 0
          %2289 = vmatprep.subr.bf16.mxu0 0
          %2290 = vmatpush1.bf16.msra.mxu0 0
          %2291 = vmatprep.subr.bf16.mxu0 0
          %2292 = vmatpush1.bf16.msra.mxu0 0
          %2293 = vmatprep.subr.bf16.mxu0 0
          %2294 = vmatpush1.bf16.msra.mxu0 0
          %2295 = vmatprep.subr.bf16.mxu0 0
          %2296 = vmatpush1.bf16.msra.mxu0 0
          %2297 = vmatprep.subr.bf16.mxu0 0
          %2298 = vmatpush1.bf16.msra.mxu0 0
          %2299 = vmatprep.subr.bf16.mxu0 0
          %2300 = vmatpush1.bf16.msra.mxu0 0
          %2301 = vmatprep.subr.bf16.mxu0 0
          %2302 = vmatpush1.bf16.msra.mxu0 %v2283
          %2303 = vmatprep.subr.bf16.mxu0 0
          %2304 = vmatpush1.bf16.msra.mxu0 %v2282
          %2305 = vmatprep.subr.bf16.mxu0 0
          %2306 = vmatpush2.bf16.msra.mxu0 0
          %2307 = vmatprep.subr.bf16.mxu0 0
          %2308 = vmatpush2.bf16.msra.mxu0 0
          %2309 = vmatprep.subr.bf16.mxu0 0
          %2310 = vmatpush2.bf16.msra.mxu0 0
          %2311 = vmatprep.subr.bf16.mxu0 0
          %2312 = vmatpush2.bf16.msra.mxu0 0
          %2313 = vmatprep.subr.bf16.mxu0 0
          %2314 = vmatpush2.bf16.msra.mxu0 0
          %2315 = vmatprep.subr.bf16.mxu0 0
          %2316 = vmatpush2.bf16.msra.mxu0 0
          %2317 = vmatprep.subr.bf16.mxu0 0
          %2318 = vmatpush2.bf16.msra.mxu0 0
          %2319 = vmatprep.subr.bf16.mxu0 0
          %2320 = vmatpush2.bf16.msra.mxu0 0
          %2321 = vmatprep.mubr.bf16.mxu0 0
          %2322 = vmatmul.mubr.bf16.gmra.mxu0 %v2287
          %v2323 = vpop.f32.mrf.mxu0
          %v2324 = vadd.f32 0.0, %v2323
          %v2325 = vpop.f32.mrf.mxu0
          %v2326 = vpop.f32.mrf.mxu0
          %v2327 = vpop.f32.mrf.mxu0
          %2328 = vdwg.mxu0
          %vm2329 = vcmask 123904
          %2330 = vst.msk [vmem:[#allocation3] sm:$0x3] %vm2329, %v2324
        $region100: #{tpu_custom_call.1} parent=91 // pred_fallthru
          _
        // Predicated region
        $region101: #{tpu_custom_call.1} parent=91 // pred_check
          %p2331 = pneg %p508
        $region102: #{tpu_custom_call.1} parent=91 // pred_check_branch
          %2333 = sbr.rel (%p2331) target = $region104
        $region103: #{tpu_custom_call.1} parent=91 // pred_region
          %s2335 = ssub.s32 32, 32
          %2336 = vsyncadd [#allocation4], %s2335
          %s2337 = smul.addr %s34, 32
          %s2338 = scalar_lea.hbm %s18, %s2337
          %s2340 = sshll.u32 [#allocation3], 4
          %s2341 = int_to_ptr.vmem [resolvable:$true] %s2340
          %2343 = dma.vmem_to_hbm [thread:$0]  %s2341, 32, %s2338, [#allocation4]
        $region104: #{tpu_custom_call.1} parent=91 // pred_fallthru
          _
        // Predicated region
        $region105: #{tpu_custom_call.1} parent=91 // pred_check
          %p2344 = pneg %p508
        $region106: #{tpu_custom_call.1} parent=91 // pred_check_branch
          %2346 = sbr.rel (%p2344) target = $region108
        $region107: #{tpu_custom_call.1} parent=91 // pred_region
          %2347 = dma.done [#allocation4], 32
        $region108: #{tpu_custom_call.1} parent=91 // pred_fallthru
          _
      $region92: #{tpu_custom_call.1} parent=5 // pred_fallthru
        _
      %p2348 = scmp.le.s32.totalorder 2, %s25
      // Predicated region
      $region109: #{tpu_custom_call.1} parent=5 // pred_check
        %p2349 = pneg %p2348
      $region110: #{tpu_custom_call.1} parent=5 // pred_check_branch
        %2351 = sbr.rel (%p2349) target = $region112
      $region111: #{tpu_custom_call.1} parent=5 // pred_region
        %s2352 = ssub.s32 %s25, 2
      $region112: #{tpu_custom_call.1} parent=5 // pred_fallthru
        _
    $region6: #{tpu_custom_call.1} parent=1 // loop_footer
      %s29 = sadd.s32 1, %s25
    $region7: #{tpu_custom_call.1} parent=1 // loop_footer_branch
      %24 = sbr.rel target = $region3
    $region8: #{tpu_custom_call.1} parent=1 // loop_exit
      _
    %2353 = vsyncpa [#allocation4], 1
    %s2354 = scalar_lea.sflag [#allocation4], 1
    %2355 = vsyncpa %s2354, 1

</llo_original>
